<compile_context>
chip_gen: v7x
topology: tpu7x:2x2x1
jax: 0.10.0
libtpu: 0.0.40
codegen_flags: <defaults>
</compile_context>

<pallas_src>
import jax
import jax.numpy as jnp
from jax.experimental import pallas as pl
from jax.experimental.pallas import tpu as pltpu

# ---- config (== SuperPointLoss.default_config) -----------------------------
RATIO = 8                    # space_to_depth_ratio
POSITIVE_MARGIN = 1.0
NEGATIVE_MARGIN = 0.2
LAMBDA_D = 250.0
LAMBDA = 0.0001
DESC_THRESHOLD = 8.0         # pixels; cell pitch is 8 px
CELL_THRESH_SQ = (DESC_THRESHOLD / 8.0) ** 2   # == 1.0 in cell units

DET_TILE_N = 8192            # detector pixels per tile (multiple of 128)
DESC_TILE_N2 = 512           # descriptor cells per tile, sublane side (desc2)
DESC_TILE_N1 = 1024          # descriptor cells per tile, lane side   (desc1)
VMEM_LIMIT = 48 * 1024 * 1024


# ---------------------------------------------------------------------------
# glue helpers (plain JAX)
# ---------------------------------------------------------------------------
def space_to_depth(x, r):
    """x: (B, C, H, W) -> (B, C*r*r, H//r, W//r) (matches unfold(kernel=r, stride=r))."""
    B, C, H, W = x.shape
    x = x.reshape(B, C, H // r, r, W // r, r)
    x = jnp.transpose(x, (0, 1, 3, 5, 2, 4))
    return x.reshape(B, C * r * r, H // r, W // r)


def _pick_tile(n, max_tile):
    """Tile size along N: lane-aligned (multiple of 128), capped at max_tile."""
    n128 = ((n + 127) // 128) * 128
    tn = min(max_tile, n128)
    nt = -(-n // tn)
    return tn, nt, nt * tn


# ---------------------------------------------------------------------------
# Pallas kernels
# ---------------------------------------------------------------------------
def _detector_kernel(logits_ref, labels_ref, valid_ref, out_ref):
    # logits_ref: (1, C, TN) native dtype   labels_ref: (1, 1, TN) i32
    # valid_ref : (1, 1, TN) f32            out_ref:    (1, 1, 1, 128) f32
    x = logits_ref[0].astype(jnp.float32)              # (C, TN)
    lab = labels_ref[0]                                 # (1, TN)
    v = valid_ref[0]                                    # (1, TN)

    # cross entropy (reduction='none'):  lse(logits) - logits[label]
    m = jnp.max(x, axis=0, keepdims=True)               # (1, TN)
    lse = m + jnp.log(jnp.sum(jnp.exp(x - m), axis=0, keepdims=True))
    cidx = jax.lax.broadcasted_iota(jnp.int32, x.shape, 0)
    picked = jnp.sum(jnp.where(cidx == lab, x, 0.0), axis=0, keepdims=True)
    ce = (lse - picked) * v                              # (1, TN)

    # per-(b, tile) partial sum; no cross-step accumulation -> fully parallel grid
    out_ref[...] = jnp.zeros_like(out_ref) + jnp.sum(ce, axis=1, keepdims=True)


def _make_descriptor_kernel(tn2, tn1, wc, d2_rows):
    """Descriptor-loss tile kernel (closure over static tile geometry)."""
    max_gap = int(wc) + 1      # max |n2 - n1| over any correspondence pair

    def kernel(d2_ref, d1_ref, vm2_ref, vm1_ref, hw2_ref, hw1_ref,
               pos_ref, neg_ref):
        # d1_ref: (1, D, TN1) bf16
        # d2_ref: (1, TN2, D) bf16 if d2_rows else (1, D, TN2) bf16
        # vm2_ref: (1, 1, TN2) f32   vm1_ref: (1, 1, TN1) f32
        # hw2_ref: (1, TN2, 2) f32   hw1_ref: (1, 2, TN1) f32
        # pos_ref / neg_ref: (1, 1, 1, 128) f32 accumulators (revisited along i1)
        i2 = pl.program_id(1)
        i1 = pl.program_id(2)

        @pl.when(i1 == 0)
        def _():
            pos_ref[...] = jnp.zeros_like(pos_ref)
            neg_ref[...] = jnp.zeros_like(neg_ref)

        d1 = d1_ref[0]                                   # (D, TN1) bf16
        if d2_rows:
            dot = jax.lax.dot_general(                    # (TN2, D) x (D, TN1)
                d2_ref[0], d1, (((1,), (0,)), ((), ())),
                preferred_element_type=jnp.float32)
        else:
            dot = jax.lax.dot_general(                    # contract dim-0 of both
                d2_ref[0], d1, (((0,), (0,)), ((), ())),
                preferred_element_type=jnp.float32)       # (TN2, TN1)

        vm2r = vm2_ref[0]                                # (1, TN2)
        vm1r = vm1_ref[0]                                # (1, TN1)

        def masked_sum(t):
            # sum_{k,n} vm2[k] * vm1[n] * t[k,n]  ==  (vm2_row @ t) . vm1_row
            r = jax.lax.dot_general(vm2r, t, (((1,), (0,)), ((), ())),
                                    preferred_element_type=jnp.float32)  # (1, TN1)
            return jnp.sum(r * vm1r, axis=1, keepdims=True)              # (1, 1)

        # Static near-band test: correspondences require |n2 - n1| <= Wc(+1);
        # skip the corr/positive path entirely for far tile pairs.
        lo2 = i2 * tn2
        lo1 = i1 * tn1
        gap = jnp.maximum(lo1 - (lo2 + (tn2 - 1)), lo2 - (lo1 + (tn1 - 1)))
        near_possible = gap <= max_gap

        @pl.when(near_possible)
        def _():
            hw2 = hw2_ref[0]                             # (TN2, 2)
            hw1 = hw1_ref[0]                             # (2, TN1)
            dh = hw2[:, 0:1] - hw1[0:1, :]               # (TN2, TN1)
            dw = hw2[:, 1:2] - hw1[1:2, :]
            near = (dh * dh + dw * dw) <= CELL_THRESH_SQ  # bool
            pos = jnp.where(near, jnp.maximum(0.0, POSITIVE_MARGIN - dot), 0.0)
            neg = jnp.where(near, 0.0, jnp.maximum(0.0, dot - NEGATIVE_MARGIN))
            pos_ref[...] += masked_sum(pos)
            neg_ref[...] += masked_sum(neg)

        @pl.when(jnp.logical_not(near_possible))
        def _():
            neg = jnp.maximum(0.0, dot - NEGATIVE_MARGIN)
            neg_ref[...] += masked_sum(neg)

    return kernel


# ---------------------------------------------------------------------------
# loss wrappers
# ---------------------------------------------------------------------------
def detector_loss(logits, keypoint_map, valid_mask, rng_key):
    """logits: (B, 65, Hc, Wc), keypoint_map: (B, H, W), valid_mask: (B, 1, H, W)."""
    B, C, Hc, Wc = logits.shape
    N = Hc * Wc
    tn, nT, N_pad = _pick_tile(N, DET_TILE_N)
    pad = N_pad - N

    # label construction (glue, plain JAX)
    labels64 = space_to_depth(keypoint_map[:, None].astype(jnp.float32), RATIO)
    # TODO(synk): torch.rand stream reproduced with a JAX PRNG key (labels match
    # the PyTorch module only in distribution, not bit-for-bit).
    noisy = 3.0 * labels64 + jax.random.uniform(rng_key, labels64.shape,
                                                dtype=jnp.float32)
    full = jnp.concatenate(
        [noisy, 2.0 * jnp.ones((B, 1, Hc, Wc), jnp.float32)], axis=1)
    labels = jnp.argmax(full, axis=1).astype(jnp.int32)          # (B, Hc, Wc)

    vm = jnp.prod(space_to_depth(valid_mask.astype(jnp.float32), RATIO), axis=1)

    # channels on sublanes, pixels on lanes; keep the logits' native dtype
    # (cast to f32 inside the kernel) to avoid an extra HBM copy.
    logits_in = logits.reshape(B, C, N)
    labels_in = labels.reshape(B, 1, N)
    vm_in = vm.reshape(B, 1, N).astype(jnp.float32)
    if pad:
        logits_in = jnp.pad(logits_in, ((0, 0), (0, 0), (0, pad)))
        labels_in = jnp.pad(labels_in, ((0, 0), (0, 0), (0, pad)))
        vm_in = jnp.pad(vm_in, ((0, 0), (0, 0), (0, pad)))

    den = jnp.sum(vm.reshape(B, -1), axis=1)                      # (B,)

    num_part = pl.pallas_call(
        _detector_kernel,
        out_shape=jax.ShapeDtypeStruct((B, nT, 1, 128), jnp.float32),
        grid_spec=pltpu.PrefetchScalarGridSpec(
            num_scalar_prefetch=0,
            grid=(B, nT),
            in_specs=[
                pl.BlockSpec((1, C, tn), lambda b, t: (b, 0, t)),
                pl.BlockSpec((1, 1, tn), lambda b, t: (b, 0, t)),
                pl.BlockSpec((1, 1, tn), lambda b, t: (b, 0, t)),
            ],
            out_specs=pl.BlockSpec((1, 1, 1, 128), lambda b, t: (b, t, 0, 0)),
        ),
        compiler_params=pltpu.CompilerParams(
            dimension_semantics=("parallel", "parallel"),
            vmem_limit_bytes=VMEM_LIMIT),
    )(logits_in, labels_in, vm_in)

    num = jnp.sum(num_part[:, :, 0, 0], axis=1)                   # (B,)
    # per-batch mean CE over valid cells, then batch mean (unguarded divide,
    # matching the reference).
    return jnp.mean(num / den)


def descriptor_loss(desc1, desc2, valid_mask1, valid_mask2):
    """desc*: (B, D, Hc, Wc), valid_mask*: (B, 1, H, W).  Dense (non-sparse) path.
    # TODO(synk): homography warping (warp_points_pytorch) not implemented;
    # with no 'homography' in data the warped cells equal the cell centers.
    # TODO(synk): the correspondence mask is batch-independent; it is recomputed
    # per batch (acceptable for small B).
    """
    B, D, Hc, Wc = desc1.shape
    N = Hc * Wc
    tn2, nT2, N_pad2 = _pick_tile(N, DESC_TILE_N2)
    tn1, nT1, N_pad1 = _pick_tile(N, DESC_TILE_N1)
    pad2 = N_pad2 - N
    pad1 = N_pad1 - N

    d2_rows = D >= 128   # (B, N, D) layout avoids in-kernel transpose when lanes stay dense

    # bf16 descriptors for the MXU (f32 accumulate in-kernel)
    d1 = desc1.astype(jnp.bfloat16).reshape(B, D, N)
    if pad1:
        d1 = jnp.pad(d1, ((0, 0), (0, 0), (0, pad1)))

    if d2_rows:
        d2 = jnp.transpose(desc2.reshape(B, D, N), (0, 2, 1)).astype(jnp.bfloat16)
        if pad2:
            d2 = jnp.pad(d2, ((0, 0), (0, pad2), (0, 0)))
        d2_spec = pl.BlockSpec((1, tn2, D), lambda b, i2, i1: (b, i2, 0))
    else:
        d2 = desc2.astype(jnp.bfloat16).reshape(B, D, N)
        if pad2:
            d2 = jnp.pad(d2, ((0, 0), (0, 0), (0, pad2)))
        d2_spec = pl.BlockSpec((1, D, tn2), lambda b, i2, i1: (b, 0, i2))

    vm1 = jnp.prod(space_to_depth(valid_mask1.astype(jnp.float32), RATIO),
                   axis=1).reshape(B, N)
    vm2 = jnp.prod(space_to_depth(valid_mask2.astype(jnp.float32), RATIO),
                   axis=1).reshape(B, N)

    # valid_mask is a rank-1 outer product -> its sum factorizes (done in JAX)
    norm = jnp.sum(vm2, axis=1) * jnp.sum(vm1, axis=1)            # (B,)

    # per-cell (h, w) indices, row-major flatten (n = h*Wc + w); pads get
    # distinct far sentinels so padded cells can never be "near".
    idx = jnp.arange(N, dtype=jnp.int32)
    hh = (idx // Wc).astype(jnp.float32)
    ww = (idx % Wc).astype(jnp.float32)
    hh1 = jnp.pad(hh, (0, pad1), constant_values=-1e6)
    ww1 = jnp.pad(ww, (0, pad1), constant_values=-1e6)
    hh2 = jnp.pad(hh, (0, pad2), constant_values=1e6)
    ww2 = jnp.pad(ww, (0, pad2), constant_values=1e6)

    vm1_in = jnp.pad(vm1, ((0, 0), (0, pad1))).reshape(B, 1, N_pad1)
    vm2_in = jnp.pad(vm2, ((0, 0), (0, pad2))).reshape(B, 1, N_pad2)
    hw1 = jnp.stack([hh1, ww1], axis=0).reshape(1, 2, N_pad1)
    hw2 = jnp.stack([hh2, ww2], axis=1).reshape(1, N_pad2, 2)

    kernel = _make_descriptor_kernel(tn2, tn1, Wc, d2_rows)

    pos_part, neg_part = pl.pallas_call(
        kernel,
        out_shape=(jax.ShapeDtypeStruct((B, nT2, 1, 128), jnp.float32),
                   jax.ShapeDtypeStruct((B, nT2, 1, 128), jnp.float32)),
        grid_spec=pltpu.PrefetchScalarGridSpec(
            num_scalar_prefetch=0,
            grid=(B, nT2, nT1),
            in_specs=[
                d2_spec,                                                   # d2
                pl.BlockSpec((1, D, tn1), lambda b, i2, i1: (b, 0, i1)),   # d1
                pl.BlockSpec((1, 1, tn2), lambda b, i2, i1: (b, 0, i2)),   # vm2 row
                pl.BlockSpec((1, 1, tn1), lambda b, i2, i1: (b, 0, i1)),   # vm1 row
                pl.BlockSpec((1, tn2, 2), lambda b, i2, i1: (0, i2, 0)),   # hw2 col
                pl.BlockSpec((1, 2, tn1), lambda b, i2, i1: (0, 0, i1)),   # hw1 row
            ],
            out_specs=(
                pl.BlockSpec((1, 1, 1, 128), lambda b, i2, i1: (b, i2, 0, 0)),
                pl.BlockSpec((1, 1, 1, 128), lambda b, i2, i1: (b, i2, 0, 0)),
            ),
        ),
        compiler_params=pltpu.CompilerParams(
            dimension_semantics=("parallel", "parallel", "arbitrary"),
            vmem_limit_bytes=VMEM_LIMIT),
    )(d2, d1, vm2_in, vm1_in, hw2, hw1)

    # LAMBDA_D hoisted out of the kernel: re-apply to both the loss and the
    # reported positive_dist (reference bakes lambda_d into positive_dist).
    pos_b = jnp.sum(pos_part[:, :, 0, 0], axis=1) * LAMBDA_D       # (B,)
    neg_b = jnp.sum(neg_part[:, :, 0, 0], axis=1)

    loss = jnp.mean((pos_b + neg_b) / norm)
    pos_d = jnp.mean(pos_b / norm)
    neg_d = jnp.mean(neg_b / norm)
    return loss, pos_d, neg_d


def superpoint_loss(pred, data, pred2, data2, rng_key):
    """Mirrors SuperPointLoss.forward with the default config (jit-able)."""
    k1, k2 = jax.random.split(rng_key, 2)

    det1 = detector_loss(pred['logits'], data['keypoints'],
                         data['valid_mask'], k1)
    det2 = detector_loss(pred2['logits'], data2['keypoints'],
                         data2['valid_mask'], k2)
    d_loss, pos_d, neg_d = descriptor_loss(pred['desc'], pred2['desc'],
                                           data['valid_mask'], data2['valid_mask'])

    loss = (det1 + det2 + LAMBDA * d_loss).reshape(1)
    components = {
        'detector_loss1': det1,
        'detector_loss2': det2,
        'descriptor_loss': d_loss,
        'positive_dist': pos_d,
        'negative_dist': neg_d,
    }
    return loss, components


# ---------------------------------------------------------------------------
if __name__ == "__main__":
    key = jax.random.PRNGKey(0)
    ks = jax.random.split(key, 10)

    B, H, W, D = 2, 16, 16, 32          # Hc = Wc = 2, 65 detector channels
    Hc, Wc = H // RATIO, W // RATIO

    logits1 = jax.random.normal(ks[0], (B, 65, Hc, Wc), jnp.float32)
    desc1 = jax.random.normal(ks[1], (B, D, Hc, Wc), jnp.float32)
    logits2 = jax.random.normal(ks[2], (B, 65, Hc, Wc), jnp.float32)
    desc2 = jax.random.normal(ks[3], (B, D, Hc, Wc), jnp.float32)

    kp1 = (jax.random.uniform(ks[4], (B, H, W)) > 0.95).astype(jnp.float32)
    kp2 = (jax.random.uniform(ks[5], (B, H, W)) > 0.95).astype(jnp.float32)

    vmask1 = jnp.ones((B, 1, H, W), jnp.float32)
    vmask1 = vmask1.at[0, :, :RATIO, :RATIO].set(0.0)   # invalidate one cell
    vmask2 = jnp.ones((B, 1, H, W), jnp.float32)

    pred = {'logits': logits1, 'desc': desc1}
    pred2 = {'logits': logits2, 'desc': desc2}
    data = {'keypoints': kp1, 'valid_mask': vmask1}
    data2 = {'keypoints': kp2, 'valid_mask': vmask2}

    loss_fn = jax.jit(superpoint_loss)
    loss, comps = loss_fn(pred, data, pred2, data2, ks[6])
    jax.block_until_ready((loss, comps))

    # also exercise the D >= 128 descriptor layout (native (TN2,D)x(D,TN1) matmul)
    descA = jax.random.normal(ks[7], (B, 128, Hc, Wc), jnp.float32)
    descB = jax.random.normal(ks[8], (B, 128, Hc, Wc), jnp.float32)
    dloss = jax.jit(descriptor_loss)(descA, descB, vmask1, vmask2)
    jax.block_until_ready(dloss)

    print("KERNEL_OK")
</pallas_src>

<mosaic_0001>
module attributes {stable_mosaic.version = 11 : i64} {
  func.func @kernel(%arg0: i32, %arg1: i32, %arg2: i32, %arg3: memref<1x32x128xbf16, #tpu.memory_space<vmem>>, %arg4: memref<1x32x128xbf16, #tpu.memory_space<vmem>>, %arg5: memref<1x1x128xf32, #tpu.memory_space<vmem>>, %arg6: memref<1x1x128xf32, #tpu.memory_space<vmem>>, %arg7: memref<1x128x2xf32, #tpu.memory_space<vmem>>, %arg8: memref<1x2x128xf32, #tpu.memory_space<vmem>>, %arg9: memref<1x1x1x128xf32, #tpu.memory_space<vmem>>, %arg10: memref<1x1x1x128xf32, #tpu.memory_space<vmem>>) attributes {dimension_semantics = [#tpu.dimension_semantics<parallel>, #tpu.dimension_semantics<parallel>, #tpu.dimension_semantics<arbitrary>], iteration_bounds = array<i64: 2, 1, 1>, scalar_prefetch = 0 : i64, scratch_operands = 0 : i64, tpu.core_type = #tpu.core_type<tc>, window_params = [{transform_indices = @transform_0, window_bounds = array<i64: 1, 32, 128>}, {transform_indices = @transform_1, window_bounds = array<i64: 1, 32, 128>}, {transform_indices = @transform_2, window_bounds = array<i64: 1, 1, 128>}, {transform_indices = @transform_3, window_bounds = array<i64: 1, 1, 128>}, {transform_indices = @transform_4, window_bounds = array<i64: 1, 128, 2>}, {transform_indices = @transform_5, window_bounds = array<i64: 1, 2, 128>}, {transform_indices = @transform_6, window_bounds = array<i64: 1, 1, 1, 128>}, {transform_indices = @transform_7, window_bounds = array<i64: 1, 1, 1, 128>}]} {
    %c0_i32 = arith.constant 0 : i32
    %0 = arith.cmpi eq, %arg2, %c0_i32 : i32
    %1 = arith.extui %0 : i1 to i32
    %c0_i32_0 = arith.constant 0 : i32
    %2 = arith.cmpi ne, %1, %c0_i32_0 : i32
    scf.if %2 {
      %cst_16 = arith.constant 0.000000e+00 : f32
      %25 = vector.broadcast %cst_16 : f32 to vector<1x1x1x128xf32>
      %c0_17 = arith.constant 0 : index
      %c0_18 = arith.constant 0 : index
      %c0_19 = arith.constant 0 : index
      %c0_20 = arith.constant 0 : index
      %26 = vector.load %arg9[%c0_17, %c0_18, %c0_19, %c0_20] : memref<1x1x1x128xf32, #tpu.memory_space<vmem>>, vector<1x1x1x128xf32>
      tpu.vector_store %arg9[%c0_17, %c0_18, %c0_19, %c0_20], %25 {strides = array<i32>} : memref<1x1x1x128xf32, #tpu.memory_space<vmem>>, vector<1x1x1x128xf32>,
      %cst_21 = arith.constant 0.000000e+00 : f32
      %27 = vector.broadcast %cst_21 : f32 to vector<1x1x1x128xf32>
      %c0_22 = arith.constant 0 : index
      %c0_23 = arith.constant 0 : index
      %c0_24 = arith.constant 0 : index
      %c0_25 = arith.constant 0 : index
      %28 = vector.load %arg10[%c0_22, %c0_23, %c0_24, %c0_25] : memref<1x1x1x128xf32, #tpu.memory_space<vmem>>, vector<1x1x1x128xf32>
      tpu.vector_store %arg10[%c0_22, %c0_23, %c0_24, %c0_25], %27 {strides = array<i32>} : memref<1x1x1x128xf32, #tpu.memory_space<vmem>>, vector<1x1x1x128xf32>,
    } else {
    }
    %c0 = arith.constant 0 : index
    %c0_1 = arith.constant 0 : index
    %c0_2 = arith.constant 0 : index
    %3 = vector.load %arg4[%c0, %c0_1, %c0_2] : memref<1x32x128xbf16, #tpu.memory_space<vmem>>, vector<1x32x128xbf16>
    %4 = vector.shape_cast %3 : vector<1x32x128xbf16> to vector<32x128xbf16>
    %c0_3 = arith.constant 0 : index
    %c0_4 = arith.constant 0 : index
    %c0_5 = arith.constant 0 : index
    %5 = vector.load %arg3[%c0_3, %c0_4, %c0_5] : memref<1x32x128xbf16, #tpu.memory_space<vmem>>, vector<1x32x128xbf16>
    %6 = vector.shape_cast %5 : vector<1x32x128xbf16> to vector<32x128xbf16>
    %cst = arith.constant dense<0.000000e+00> : vector<128x128xf32>
    %7 = tpu.matmul %6, %4, %cst {dimension_numbers = #tpu.dot_dimension_numbers<[0], [0], [1], [1], [0, 1, 1, 1], [], []>} : vector<32x128xbf16>, vector<32x128xbf16>, vector<128x128xf32> -> vector<128x128xf32>
    %c0_6 = arith.constant 0 : index
    %c0_7 = arith.constant 0 : index
    %c0_8 = arith.constant 0 : index
    %8 = vector.load %arg5[%c0_6, %c0_7, %c0_8] : memref<1x1x128xf32, #tpu.memory_space<vmem>>, vector<1x1x128xf32>
    %9 = vector.shape_cast %8 : vector<1x1x128xf32> to vector<1x128xf32>
    %c0_9 = arith.constant 0 : index
    %c0_10 = arith.constant 0 : index
    %c0_11 = arith.constant 0 : index
    %10 = vector.load %arg6[%c0_9, %c0_10, %c0_11] : memref<1x1x128xf32, #tpu.memory_space<vmem>>, vector<1x1x128xf32>
    %11 = vector.shape_cast %10 : vector<1x1x128xf32> to vector<1x128xf32>
    %c128_i32 = arith.constant 128 : i32
    %12 = arith.muli %arg1, %c128_i32 : i32
    %c128_i32_12 = arith.constant 128 : i32
    %13 = arith.muli %arg2, %c128_i32_12 : i32
    %c127_i32 = arith.constant 127 : i32
    %14 = arith.addi %12, %c127_i32 : i32
    %15 = arith.subi %13, %14 : i32
    %c127_i32_13 = arith.constant 127 : i32
    %16 = arith.addi %13, %c127_i32_13 : i32
    %17 = arith.subi %12, %16 : i32
    %18 = arith.maxsi %15, %17 : i32
    %c3_i32 = arith.constant 3 : i32
    %19 = arith.cmpi sle, %18, %c3_i32 : i32
    %20 = arith.extui %19 : i1 to i32
    %c0_i32_14 = arith.constant 0 : i32
    %21 = arith.cmpi ne, %20, %c0_i32_14 : i32
    scf.if %21 {
      %c0_16 = arith.constant 0 : index
      %c0_17 = arith.constant 0 : index
      %c0_18 = arith.constant 0 : index
      %25 = vector.load %arg7[%c0_16, %c0_17, %c0_18] : memref<1x128x2xf32, #tpu.memory_space<vmem>>, vector<1x128x2xf32>
      %26 = vector.shape_cast %25 : vector<1x128x2xf32> to vector<128x2xf32>
      %c0_19 = arith.constant 0 : index
      %c0_20 = arith.constant 0 : index
      %c0_21 = arith.constant 0 : index
      %27 = vector.load %arg8[%c0_19, %c0_20, %c0_21] : memref<1x2x128xf32, #tpu.memory_space<vmem>>, vector<1x2x128xf32>
      %28 = vector.shape_cast %27 : vector<1x2x128xf32> to vector<2x128xf32>
      %29 = vector.extract_strided_slice %26 {offsets = [0, 0], sizes = [128, 1], strides = [1, 1]} : vector<128x2xf32> to vector<128x1xf32>
      %30 = vector.extract_strided_slice %28 {offsets = [0, 0], sizes = [1, 128], strides = [1, 1]} : vector<2x128xf32> to vector<1x128xf32>
      %31 = vector.broadcast %29 : vector<128x1xf32> to vector<128x128xf32>
      %32 = vector.broadcast %30 : vector<1x128xf32> to vector<128x128xf32>
      %33 = arith.subf %31, %32 : vector<128x128xf32>
      %34 = vector.extract_strided_slice %26 {offsets = [0, 1], sizes = [128, 1], strides = [1, 1]} : vector<128x2xf32> to vector<128x1xf32>
      %35 = vector.extract_strided_slice %28 {offsets = [1, 0], sizes = [1, 128], strides = [1, 1]} : vector<2x128xf32> to vector<1x128xf32>
      %36 = vector.broadcast %34 : vector<128x1xf32> to vector<128x128xf32>
      %37 = vector.broadcast %35 : vector<1x128xf32> to vector<128x128xf32>
      %38 = arith.subf %36, %37 : vector<128x128xf32>
      %39 = arith.mulf %33, %33 : vector<128x128xf32>
      %40 = arith.mulf %38, %38 : vector<128x128xf32>
      %41 = arith.addf %39, %40 : vector<128x128xf32>
      %cst_22 = arith.constant 1.000000e+00 : f32
      %42 = vector.broadcast %cst_22 : f32 to vector<128x128xf32>
      %43 = arith.cmpf ole, %41, %42 : vector<128x128xf32>
      %cst_23 = arith.constant 1.000000e+00 : f32
      %44 = vector.broadcast %cst_23 : f32 to vector<128x128xf32>
      %45 = arith.subf %44, %7 : vector<128x128xf32>
      %cst_24 = arith.constant 0.000000e+00 : f32
      %46 = vector.broadcast %cst_24 : f32 to vector<128x128xf32>
      %47 = arith.maximumf %46, %45 : vector<128x128xf32>
      %cst_25 = arith.constant 0.000000e+00 : f32
      %48 = vector.broadcast %cst_25 : f32 to vector<128x128xf32>
      %49 = arith.select %43, %47, %48 : vector<128x128xi1>, vector<128x128xf32>
      %cst_26 = arith.constant 2.000000e-01 : f32
      %50 = vector.broadcast %cst_26 : f32 to vector<128x128xf32>
      %51 = arith.subf %7, %50 : vector<128x128xf32>
      %cst_27 = arith.constant 0.000000e+00 : f32
      %52 = vector.broadcast %cst_27 : f32 to vector<128x128xf32>
      %53 = arith.maximumf %52, %51 : vector<128x128xf32>
      %cst_28 = arith.constant 0.000000e+00 : f32
      %54 = vector.broadcast %cst_28 : f32 to vector<128x128xf32>
      %55 = arith.select %43, %54, %53 : vector<128x128xi1>, vector<128x128xf32>
      %c0_29 = arith.constant 0 : index
      %c0_30 = arith.constant 0 : index
      %c0_31 = arith.constant 0 : index
      %c0_32 = arith.constant 0 : index
      %56 = vector.load %arg9[%c0_29, %c0_30, %c0_31, %c0_32] : memref<1x1x1x128xf32, #tpu.memory_space<vmem>>, vector<1x1x1x128xf32>
      %cst_33 = arith.constant dense<0.000000e+00> : vector<1x128xf32>
      %57 = tpu.matmul %9, %49, %cst_33 {dimension_numbers = #tpu.dot_dimension_numbers<[1], [0], [0], [1], [0, 0, 1, 1], [], []>} : vector<1x128xf32>, vector<128x128xf32>, vector<1x128xf32> -> vector<1x128xf32>
      %58 = arith.mulf %57, %11 : vector<1x128xf32>
      %cst_34 = arith.constant dense<0.000000e+00> : vector<1xf32>
      %59 = vector.multi_reduction <add>, %58, %cst_34 [1] : vector<1x128xf32> to vector<1xf32>
      %60 = vector.shape_cast %59 : vector<1xf32> to vector<1x1xf32>
      %61 = vector.shape_cast %60 : vector<1x1xf32> to vector<1x1x1x1xf32>
      %62 = vector.broadcast %61 : vector<1x1x1x1xf32> to vector<1x1x1x128xf32>
      %63 = arith.addf %56, %62 : vector<1x1x1x128xf32>
      %c0_35 = arith.constant 0 : index
      %c0_36 = arith.constant 0 : index
      %c0_37 = arith.constant 0 : index
      %c0_38 = arith.constant 0 : index
      %64 = vector.load %arg9[%c0_35, %c0_36, %c0_37, %c0_38] : memref<1x1x1x128xf32, #tpu.memory_space<vmem>>, vector<1x1x1x128xf32>
      tpu.vector_store %arg9[%c0_35, %c0_36, %c0_37, %c0_38], %63 {strides = array<i32>} : memref<1x1x1x128xf32, #tpu.memory_space<vmem>>, vector<1x1x1x128xf32>,
      %c0_39 = arith.constant 0 : index
      %c0_40 = arith.constant 0 : index
      %c0_41 = arith.constant 0 : index
      %c0_42 = arith.constant 0 : index
      %65 = vector.load %arg10[%c0_39, %c0_40, %c0_41, %c0_42] : memref<1x1x1x128xf32, #tpu.memory_space<vmem>>, vector<1x1x1x128xf32>
      %cst_43 = arith.constant dense<0.000000e+00> : vector<1x128xf32>
      %66 = tpu.matmul %9, %55, %cst_43 {dimension_numbers = #tpu.dot_dimension_numbers<[1], [0], [0], [1], [0, 0, 1, 1], [], []>} : vector<1x128xf32>, vector<128x128xf32>, vector<1x128xf32> -> vector<1x128xf32>
      %67 = arith.mulf %66, %11 : vector<1x128xf32>
      %cst_44 = arith.constant dense<0.000000e+00> : vector<1xf32>
      %68 = vector.multi_reduction <add>, %67, %cst_44 [1] : vector<1x128xf32> to vector<1xf32>
      %69 = vector.shape_cast %68 : vector<1xf32> to vector<1x1xf32>
      %70 = vector.shape_cast %69 : vector<1x1xf32> to vector<1x1x1x1xf32>
      %71 = vector.broadcast %70 : vector<1x1x1x1xf32> to vector<1x1x1x128xf32>
      %72 = arith.addf %65, %71 : vector<1x1x1x128xf32>
      %c0_45 = arith.constant 0 : index
      %c0_46 = arith.constant 0 : index
      %c0_47 = arith.constant 0 : index
      %c0_48 = arith.constant 0 : index
      %73 = vector.load %arg10[%c0_45, %c0_46, %c0_47, %c0_48] : memref<1x1x1x128xf32, #tpu.memory_space<vmem>>, vector<1x1x1x128xf32>
      tpu.vector_store %arg10[%c0_45, %c0_46, %c0_47, %c0_48], %72 {strides = array<i32>} : memref<1x1x1x128xf32, #tpu.memory_space<vmem>>, vector<1x1x1x128xf32>,
    } else {
    }
    %true = arith.constant true
    %22 = arith.xori %19, %true : i1
    %23 = arith.extui %22 : i1 to i32
    %c0_i32_15 = arith.constant 0 : i32
    %24 = arith.cmpi ne, %23, %c0_i32_15 : i32
    scf.if %24 {
      %cst_16 = arith.constant 2.000000e-01 : f32
      %25 = vector.broadcast %cst_16 : f32 to vector<128x128xf32>
      %26 = arith.subf %7, %25 : vector<128x128xf32>
      %cst_17 = arith.constant 0.000000e+00 : f32
      %27 = vector.broadcast %cst_17 : f32 to vector<128x128xf32>
      %28 = arith.maximumf %27, %26 : vector<128x128xf32>
      %c0_18 = arith.constant 0 : index
      %c0_19 = arith.constant 0 : index
      %c0_20 = arith.constant 0 : index
      %c0_21 = arith.constant 0 : index
      %29 = vector.load %arg10[%c0_18, %c0_19, %c0_20, %c0_21] : memref<1x1x1x128xf32, #tpu.memory_space<vmem>>, vector<1x1x1x128xf32>
      %cst_22 = arith.constant dense<0.000000e+00> : vector<1x128xf32>
      %30 = tpu.matmul %9, %28, %cst_22 {dimension_numbers = #tpu.dot_dimension_numbers<[1], [0], [0], [1], [0, 0, 1, 1], [], []>} : vector<1x128xf32>, vector<128x128xf32>, vector<1x128xf32> -> vector<1x128xf32>
      %31 = arith.mulf %30, %11 : vector<1x128xf32>
      %cst_23 = arith.constant dense<0.000000e+00> : vector<1xf32>
      %32 = vector.multi_reduction <add>, %31, %cst_23 [1] : vector<1x128xf32> to vector<1xf32>
      %33 = vector.shape_cast %32 : vector<1xf32> to vector<1x1xf32>
      %34 = vector.shape_cast %33 : vector<1x1xf32> to vector<1x1x1x1xf32>
      %35 = vector.broadcast %34 : vector<1x1x1x1xf32> to vector<1x1x1x128xf32>
      %36 = arith.addf %29, %35 : vector<1x1x1x128xf32>
      %c0_24 = arith.constant 0 : index
      %c0_25 = arith.constant 0 : index
      %c0_26 = arith.constant 0 : index
      %c0_27 = arith.constant 0 : index
      %37 = vector.load %arg10[%c0_24, %c0_25, %c0_26, %c0_27] : memref<1x1x1x128xf32, #tpu.memory_space<vmem>>, vector<1x1x1x128xf32>
      tpu.vector_store %arg10[%c0_24, %c0_25, %c0_26, %c0_27], %36 {strides = array<i32>} : memref<1x1x1x128xf32, #tpu.memory_space<vmem>>, vector<1x1x1x128xf32>,
    } else {
    }
    return
  }
  func.func @transform_0(%arg0: i32, %arg1: i32, %arg2: i32) -> (i32, i32, i32) {
    %c0_i32 = arith.constant 0 : i32
    %c0_i32_0 = arith.constant 0 : i32
    return %arg0, %c0_i32, %arg1 : i32, i32, i32
  }
  func.func @transform_1(%arg0: i32, %arg1: i32, %arg2: i32) -> (i32, i32, i32) {
    %c0_i32 = arith.constant 0 : i32
    %c0_i32_0 = arith.constant 0 : i32
    return %arg0, %c0_i32, %arg2 : i32, i32, i32
  }
  func.func @transform_2(%arg0: i32, %arg1: i32, %arg2: i32) -> (i32, i32, i32) {
    %c0_i32 = arith.constant 0 : i32
    %c0_i32_0 = arith.constant 0 : i32
    return %arg0, %c0_i32, %arg1 : i32, i32, i32
  }
  func.func @transform_3(%arg0: i32, %arg1: i32, %arg2: i32) -> (i32, i32, i32) {
    %c0_i32 = arith.constant 0 : i32
    %c0_i32_0 = arith.constant 0 : i32
    return %arg0, %c0_i32, %arg2 : i32, i32, i32
  }
  func.func @transform_4(%arg0: i32, %arg1: i32, %arg2: i32) -> (i32, i32, i32) {
    %c0_i32 = arith.constant 0 : i32
    %c0_i32_0 = arith.constant 0 : i32
    %c0_i32_1 = arith.constant 0 : i32
    return %c0_i32, %arg1, %c0_i32_0 : i32, i32, i32
  }
  func.func @transform_5(%arg0: i32, %arg1: i32, %arg2: i32) -> (i32, i32, i32) {
    %c0_i32 = arith.constant 0 : i32
    %c0_i32_0 = arith.constant 0 : i32
    %c0_i32_1 = arith.constant 0 : i32
    return %c0_i32, %c0_i32_0, %arg2 : i32, i32, i32
  }
  func.func @transform_6(%arg0: i32, %arg1: i32, %arg2: i32) -> (i32, i32, i32, i32) {
    %c0_i32 = arith.constant 0 : i32
    %c0_i32_0 = arith.constant 0 : i32
    %c0_i32_1 = arith.constant 0 : i32
    return %arg0, %arg1, %c0_i32, %c0_i32_0 : i32, i32, i32, i32
  }
  func.func @transform_7(%arg0: i32, %arg1: i32, %arg2: i32) -> (i32, i32, i32, i32) {
    %c0_i32 = arith.constant 0 : i32
    %c0_i32_0 = arith.constant 0 : i32
    %c0_i32_1 = arith.constant 0 : i32
    return %arg0, %arg1, %c0_i32, %c0_i32_0 : i32, i32, i32, i32
  }
}

module attributes {stable_mosaic.version = 11 : i64} {
  func.func @_detector_kernel(%arg0: i32, %arg1: i32, %arg2: memref<1x65x128xf32, #tpu.memory_space<vmem>>, %arg3: memref<1x1x128xi32, #tpu.memory_space<vmem>>, %arg4: memref<1x1x128xf32, #tpu.memory_space<vmem>>, %arg5: memref<1x1x1x128xf32, #tpu.memory_space<vmem>>) attributes {dimension_semantics = [#tpu.dimension_semantics<parallel>, #tpu.dimension_semantics<parallel>], iteration_bounds = array<i64: 2, 1>, scalar_prefetch = 0 : i64, scratch_operands = 0 : i64, tpu.core_type = #tpu.core_type<tc>, window_params = [{transform_indices = @transform_0, window_bounds = array<i64: 1, 65, 128>}, {transform_indices = @transform_1, window_bounds = array<i64: 1, 1, 128>}, {transform_indices = @transform_2, window_bounds = array<i64: 1, 1, 128>}, {transform_indices = @transform_3, window_bounds = array<i64: 1, 1, 1, 128>}]} {
    %c0 = arith.constant 0 : index
    %c0_0 = arith.constant 0 : index
    %c0_1 = arith.constant 0 : index
    %0 = vector.load %arg2[%c0, %c0_0, %c0_1] : memref<1x65x128xf32, #tpu.memory_space<vmem>>, vector<1x65x128xf32>
    %1 = vector.shape_cast %0 : vector<1x65x128xf32> to vector<65x128xf32>
    %c0_2 = arith.constant 0 : index
    %c0_3 = arith.constant 0 : index
    %c0_4 = arith.constant 0 : index
    %2 = vector.load %arg3[%c0_2, %c0_3, %c0_4] : memref<1x1x128xi32, #tpu.memory_space<vmem>>, vector<1x1x128xi32>
    %3 = vector.shape_cast %2 : vector<1x1x128xi32> to vector<1x128xi32>
    %c0_5 = arith.constant 0 : index
    %c0_6 = arith.constant 0 : index
    %c0_7 = arith.constant 0 : index
    %4 = vector.load %arg4[%c0_5, %c0_6, %c0_7] : memref<1x1x128xf32, #tpu.memory_space<vmem>>, vector<1x1x128xf32>
    %5 = vector.shape_cast %4 : vector<1x1x128xf32> to vector<1x128xf32>
    %cst = arith.constant dense<0xFF800000> : vector<128xf32>
    %6 = vector.multi_reduction <maximumf>, %1, %cst [0] : vector<65x128xf32> to vector<128xf32>
    %7 = vector.shape_cast %6 : vector<128xf32> to vector<1x128xf32>
    %8 = vector.broadcast %7 : vector<1x128xf32> to vector<65x128xf32>
    %9 = arith.subf %1, %8 : vector<65x128xf32>
    %10 = math.exp %9 : vector<65x128xf32>
    %cst_8 = arith.constant dense<0.000000e+00> : vector<128xf32>
    %11 = vector.multi_reduction <add>, %10, %cst_8 [0] : vector<65x128xf32> to vector<128xf32>
    %12 = vector.shape_cast %11 : vector<128xf32> to vector<1x128xf32>
    %13 = math.log %12 : vector<1x128xf32>
    %14 = arith.addf %7, %13 : vector<1x128xf32>
    %15 = tpu.iota {dimensions = array<i32: 0>} : vector<65x128xi32>
    %16 = vector.broadcast %3 : vector<1x128xi32> to vector<65x128xi32>
    %17 = arith.cmpi eq, %15, %16 : vector<65x128xi32>
    %cst_9 = arith.constant 0.000000e+00 : f32
    %18 = vector.broadcast %cst_9 : f32 to vector<65x128xf32>
    %19 = arith.select %17, %1, %18 : vector<65x128xi1>, vector<65x128xf32>
    %cst_10 = arith.constant dense<0.000000e+00> : vector<128xf32>
    %20 = vector.multi_reduction <add>, %19, %cst_10 [0] : vector<65x128xf32> to vector<128xf32>
    %21 = vector.shape_cast %20 : vector<128xf32> to vector<1x128xf32>
    %22 = arith.subf %14, %21 : vector<1x128xf32>
    %23 = arith.mulf %22, %5 : vector<1x128xf32>
    %cst_11 = arith.constant 0.000000e+00 : f32
    %24 = vector.broadcast %cst_11 : f32 to vector<1x1x1x128xf32>
    %cst_12 = arith.constant dense<0.000000e+00> : vector<1xf32>
    %25 = vector.multi_reduction <add>, %23, %cst_12 [1] : vector<1x128xf32> to vector<1xf32>
    %26 = vector.shape_cast %25 : vector<1xf32> to vector<1x1xf32>
    %27 = vector.shape_cast %26 : vector<1x1xf32> to vector<1x1x1x1xf32>
    %28 = vector.broadcast %27 : vector<1x1x1x1xf32> to vector<1x1x1x128xf32>
    %29 = arith.addf %24, %28 : vector<1x1x1x128xf32>
    %c0_13 = arith.constant 0 : index
    %c0_14 = arith.constant 0 : index
    %c0_15 = arith.constant 0 : index
    %c0_16 = arith.constant 0 : index
    %30 = vector.load %arg5[%c0_13, %c0_14, %c0_15, %c0_16] : memref<1x1x1x128xf32, #tpu.memory_space<vmem>>, vector<1x1x1x128xf32>
    tpu.vector_store %arg5[%c0_13, %c0_14, %c0_15, %c0_16], %29 {strides = array<i32>} : memref<1x1x1x128xf32, #tpu.memory_space<vmem>>, vector<1x1x1x128xf32>,
    return
  }
  func.func @transform_0(%arg0: i32, %arg1: i32) -> (i32, i32, i32) {
    %c0_i32 = arith.constant 0 : i32
    %c0_i32_0 = arith.constant 0 : i32
    return %arg0, %c0_i32, %arg1 : i32, i32, i32
  }
  func.func @transform_1(%arg0: i32, %arg1: i32) -> (i32, i32, i32) {
    %c0_i32 = arith.constant 0 : i32
    %c0_i32_0 = arith.constant 0 : i32
    return %arg0, %c0_i32, %arg1 : i32, i32, i32
  }
  func.func @transform_2(%arg0: i32, %arg1: i32) -> (i32, i32, i32) {
    %c0_i32 = arith.constant 0 : i32
    %c0_i32_0 = arith.constant 0 : i32
    return %arg0, %c0_i32, %arg1 : i32, i32, i32
  }
  func.func @transform_3(%arg0: i32, %arg1: i32) -> (i32, i32, i32, i32) {
    %c0_i32 = arith.constant 0 : i32
    %c0_i32_0 = arith.constant 0 : i32
    %c0_i32_1 = arith.constant 0 : i32
    return %arg0, %arg1, %c0_i32, %c0_i32_0 : i32, i32, i32, i32
  }
}

</mosaic_0001>

<llo_original>
// kernel: superpoint_loss.5
$region0: #{superpoint_loss.5}
  #allocation0 [shape = 'u32[]', space=smem, size = 0x4, offset = 0x4, fixed_abs, tag = 'smem constant byte address 0x4 - core index']
  #allocation1 [shape = 'u32[144,128]{1,0:T(1,128)}', space=vmem, size = 0x12000, scoped, tag = 'internal scratch']
  %s0 = inlined_call_operand.vmem [shape: f32[2,65,128], index: 0, kind: input, shape index: {}]
  %s1 = inlined_call_operand.vmem [shape: s32[2,1,128], index: 1, kind: input, shape index: {}]
  %s2 = inlined_call_operand.vmem [shape: f32[2,1,128], index: 2, kind: input, shape index: {}]
  %s3 = inlined_call_operand.vmem [shape: f32[2,1,1,128], index: 3, kind: output, shape index: {}]
  %s4 = sld [smem:[#allocation0]]
  $region45: #{superpoint_loss.5} parent=0
    _
  %s6 = ssub.s32 1, %s4
  %s7 = scalar_select 0, %s6, %s4
  loop: start=0, step=1, limit=4
  $region2: #{superpoint_loss.5} parent=0 // loop_pre_header
    _
  $region3: #{superpoint_loss.5} parent=0 // loop_header
    %s9 = sphi 0, %s13
    %p10 = scmp.ge.s32.totalorder %s9, 4
    %s16 = sphi 0, %s28
    %s17 = sphi 0, %s24
    %s18 = sphi 0, %s16
    %s19 = sphi 0, %s17
    %s20 = sphi 0, %s18
    %s21 = sphi 0, %s19
    %s33 = sphi 0, %s35
    %s36 = sphi 0, %s33
    %s37 = sphi 0, %s36
    %s53 = sphi 0, %s37
    %s61 = sphi 0, %s63
    %s64 = sphi 0, %s61
    %s65 = sphi 0, %s64
    %s81 = sphi 0, %s65
    %s89 = sphi 0, %s91
    %s92 = sphi 0, %s89
    %s93 = sphi 0, %s92
    %s109 = sphi 0, %s93
    %s117 = sphi 0, %s119
    %s120 = sphi 0, %s117
    %s121 = sphi 0, %s120
    %s137 = sphi 0, %s121
  $region4: #{superpoint_loss.5} parent=0 // loop_header_branch
    %12 = sbr.rel (%p10) target = $region8
  $region5: #{superpoint_loss.5} parent=0 // loop_body
    %s14 = ssub.s32 %s9, 1
    %s15 = ssub.s32 %s9, 2
    %s22 = sadd.s32 1, %s17
    %p23 = scmp.ge.s32.totalorder %s22, 1
    %s24 = scalar_select %p23, 0, %s22
    %s25 = sadd.s32 1, %s16
    %s26 = scalar_select %p23, %s25, %s16
    %p27 = scmp.ge.s32.totalorder %s26, 2
    %s28 = scalar_select %p27, 0, %s26
    %s29 = ssub.s32 %s16, %s28
    %s30 = ssub.s32 %s17, %s24
    %s31 = sor.u32 %s29, %s30
    %p32 = scmp.eq.s32.totalorder %s31, 0
    %s34 = sadd.s32 %s33, 1
    %s35 = scalar_select %p32, %s33, %s34
    %p38 = pneg %p32
    %p39 = scmp.eq.s32.totalorder %s9, 1
    %p40 = por %p38, %p39
    %p41 = scmp.ne.s32.totalorder %s33, %s36
    %p42 = scmp.eq.s32.totalorder %s9, 0
    %p43 = por %p41, %p42
    %p44 = scmp.ne.s32.totalorder %s33, %s36
    %p45 = scmp.eq.s32.totalorder %s14, 1
    %p46 = por %p44, %p45
    %p47 = scmp.ne.s32.totalorder %s36, %s37
    %p48 = scmp.eq.s32.totalorder %s14, 0
    %p49 = por %p47, %p48
    %p50 = scmp.ne.s32.totalorder %s36, %s37
    %p51 = scmp.eq.s32.totalorder %s15, 1
    %p52 = por %p50, %p51
    %p54 = scmp.ne.s32.totalorder %s37, %s53
    %p55 = scmp.eq.s32.totalorder %s15, 0
    %p56 = por %p54, %p55
    %s57 = ssub.s32 %s16, %s28
    %s58 = ssub.s32 %s17, %s24
    %s59 = sor.u32 %s57, %s58
    %p60 = scmp.eq.s32.totalorder %s59, 0
    %s62 = sadd.s32 %s61, 1
    %s63 = scalar_select %p60, %s61, %s62
    %p66 = pneg %p60
    %p67 = scmp.eq.s32.totalorder %s9, 1
    %p68 = por %p66, %p67
    %p69 = scmp.ne.s32.totalorder %s61, %s64
    %p70 = scmp.eq.s32.totalorder %s9, 0
    %p71 = por %p69, %p70
    %p72 = scmp.ne.s32.totalorder %s61, %s64
    %p73 = scmp.eq.s32.totalorder %s14, 1
    %p74 = por %p72, %p73
    %p75 = scmp.ne.s32.totalorder %s64, %s65
    %p76 = scmp.eq.s32.totalorder %s14, 0
    %p77 = por %p75, %p76
    %p78 = scmp.ne.s32.totalorder %s64, %s65
    %p79 = scmp.eq.s32.totalorder %s15, 1
    %p80 = por %p78, %p79
    %p82 = scmp.ne.s32.totalorder %s65, %s81
    %p83 = scmp.eq.s32.totalorder %s15, 0
    %p84 = por %p82, %p83
    %s85 = ssub.s32 %s16, %s28
    %s86 = ssub.s32 %s17, %s24
    %s87 = sor.u32 %s85, %s86
    %p88 = scmp.eq.s32.totalorder %s87, 0
    %s90 = sadd.s32 %s89, 1
    %s91 = scalar_select %p88, %s89, %s90
    %p94 = pneg %p88
    %p95 = scmp.eq.s32.totalorder %s9, 1
    %p96 = por %p94, %p95
    %p97 = scmp.ne.s32.totalorder %s89, %s92
    %p98 = scmp.eq.s32.totalorder %s9, 0
    %p99 = por %p97, %p98
    %p100 = scmp.ne.s32.totalorder %s89, %s92
    %p101 = scmp.eq.s32.totalorder %s14, 1
    %p102 = por %p100, %p101
    %p103 = scmp.ne.s32.totalorder %s92, %s93
    %p104 = scmp.eq.s32.totalorder %s14, 0
    %p105 = por %p103, %p104
    %p106 = scmp.ne.s32.totalorder %s92, %s93
    %p107 = scmp.eq.s32.totalorder %s15, 1
    %p108 = por %p106, %p107
    %p110 = scmp.ne.s32.totalorder %s93, %s109
    %p111 = scmp.eq.s32.totalorder %s15, 0
    %p112 = por %p110, %p111
    %s113 = ssub.s32 %s16, %s28
    %s114 = ssub.s32 %s17, %s24
    %s115 = sor.u32 %s113, %s114
    %p116 = scmp.eq.s32.totalorder %s115, 0
    %s118 = sadd.s32 %s117, 1
    %s119 = scalar_select %p116, %s117, %s118
    %p122 = pneg %p116
    %p123 = scmp.eq.s32.totalorder %s9, 1
    %p124 = por %p122, %p123
    %p125 = scmp.ne.s32.totalorder %s117, %s120
    %p126 = scmp.eq.s32.totalorder %s9, 0
    %p127 = por %p125, %p126
    %p128 = scmp.ne.s32.totalorder %s117, %s120
    %p129 = scmp.eq.s32.totalorder %s14, 1
    %p130 = por %p128, %p129
    %p131 = scmp.ne.s32.totalorder %s120, %s121
    %p132 = scmp.eq.s32.totalorder %s14, 0
    %p133 = por %p131, %p132
    %p134 = scmp.ne.s32.totalorder %s120, %s121
    %p135 = scmp.eq.s32.totalorder %s15, 1
    %p136 = por %p134, %p135
    %p138 = scmp.ne.s32.totalorder %s121, %s137
    %p139 = scmp.eq.s32.totalorder %s15, 0
    %p140 = por %p138, %p139
    %p141 = scmp.le.s32.totalorder 1, %s9
    %p142 = scmp.lt.s32.totalorder %s9, 3
    %p143 = pnand %p141, %p142
    %p144 = pneg %p143
    // Predicated region
    $region9: #{superpoint_loss.5} parent=5 // pred_check
      _
    $region10: #{superpoint_loss.5} parent=5 // pred_check_branch
      %146 = sbr.rel (%p143) target = $region12
    $region11: #{superpoint_loss.5} parent=5 // pred_region
      %s147 = ssub.s32 %s9, 1
    $region12: #{superpoint_loss.5} parent=5 // pred_fallthru
      _
    %p148 = scmp.lt.s32.totalorder %s9, 2
    // Predicated region
    $region13: #{superpoint_loss.5} parent=5 // pred_check
      %p149 = pneg %p148
    $region14: #{superpoint_loss.5} parent=5 // pred_check_branch
      %151 = sbr.rel (%p149) target = $region16
    $region15: #{superpoint_loss.5} parent=5 // pred_region
      // Predicated region
      $region17: #{superpoint_loss.5} parent=15 // pred_check
        %p152 = pneg %p43
      $region18: #{superpoint_loss.5} parent=15 // pred_check_branch
        %154 = sbr.rel (%p152) target = $region20
      $region19: #{superpoint_loss.5} parent=15 // pred_region
        %p155 = scmp.lt.s32.totalorder %s16, 1
        %s156 = scalar_select %p155, %s16, 1
        %p157 = scmp.lt.s32.totalorder %s17, 0
        %s158 = scalar_select %p157, %s17, 0
        %s159 = smul.addr %s156, 9
        %s160 = sadd.s32 %s158, %s159
        %s161 = smul.addr %s160, 8
        %s162 = scalar_lea.vmem %s0, %s161
      $region20: #{superpoint_loss.5} parent=15 // pred_fallthru
        _
      // Predicated region
      $region21: #{superpoint_loss.5} parent=15 // pred_check
        %p163 = pneg %p71
      $region22: #{superpoint_loss.5} parent=15 // pred_check_branch
        %165 = sbr.rel (%p163) target = $region24
      $region23: #{superpoint_loss.5} parent=15 // pred_region
        %p166 = scmp.lt.s32.totalorder %s16, 1
        %s167 = scalar_select %p166, %s16, 1
        %p168 = scmp.lt.s32.totalorder %s17, 0
        %s169 = scalar_select %p168, %s17, 0
        %s170 = sadd.s32 %s169, %s167
        %s171 = scalar_lea.vmem %s1, %s170
      $region24: #{superpoint_loss.5} parent=15 // pred_fallthru
        _
      // Predicated region
      $region25: #{superpoint_loss.5} parent=15 // pred_check
        %p172 = pneg %p99
      $region26: #{superpoint_loss.5} parent=15 // pred_check_branch
        %174 = sbr.rel (%p172) target = $region28
      $region27: #{superpoint_loss.5} parent=15 // pred_region
        %p175 = scmp.lt.s32.totalorder %s16, 1
        %s176 = scalar_select %p175, %s16, 1
        %p177 = scmp.lt.s32.totalorder %s17, 0
        %s178 = scalar_select %p177, %s17, 0
        %s179 = sadd.s32 %s178, %s176
        %s180 = scalar_lea.vmem %s2, %s179
      $region28: #{superpoint_loss.5} parent=15 // pred_fallthru
        _
    $region16: #{superpoint_loss.5} parent=5 // pred_fallthru
      _
    %p181 = scmp.le.s32.totalorder 1, %s9
    %p182 = scmp.lt.s32.totalorder %s9, 3
    %p183 = pnand %p181, %p182
    %p184 = pneg %p183
    // Predicated region
    $region29: #{superpoint_loss.5} parent=5 // pred_check
      _
    $region30: #{superpoint_loss.5} parent=5 // pred_check_branch
      %186 = sbr.rel (%p183) target = $region32
    $region31: #{superpoint_loss.5} parent=5 // pred_region
      %s187 = ssub.s32 %s9, 1
      %p188 = scmp.lt.s32.totalorder %s18, 1
      %s189 = scalar_select %p188, %s18, 1
      %p190 = scmp.lt.s32.totalorder %s19, 0
      %s191 = scalar_select %p190, %s19, 0
      %s192 = smul.addr %s189, 9
      %s193 = sadd.s32 %s191, %s192
      %s194 = smul.addr %s193, 8
      %s195 = scalar_lea.vmem %s0, %s194
      %p196 = pneg %p49
      %p197 = pneg %p46
      %p198 = scmp.lt.s32.totalorder %s18, 1
      %s199 = scalar_select %p198, %s18, 1
      %p200 = scmp.lt.s32.totalorder %s19, 0
      %s201 = scalar_select %p200, %s19, 0
      %s202 = sadd.s32 %s201, %s199
      %s203 = scalar_lea.vmem %s1, %s202
      %p204 = pneg %p77
      %p205 = pneg %p74
      %p206 = scmp.lt.s32.totalorder %s18, 1
      %s207 = scalar_select %p206, %s18, 1
      %p208 = scmp.lt.s32.totalorder %s19, 0
      %s209 = scalar_select %p208, %s19, 0
      %s210 = sadd.s32 %s209, %s207
      %s211 = scalar_lea.vmem %s2, %s210
      %p212 = pneg %p105
      %p213 = pneg %p102
      %p214 = pneg %p133
      %p215 = pneg %p130
      %p216 = scmp.lt.s32.totalorder %s18, 1
      %s217 = scalar_select %p216, %s18, 1
      %p218 = scmp.lt.s32.totalorder %s19, 0
      %s219 = scalar_select %p218, %s19, 0
      %s220 = sadd.s32 %s219, %s217
      %s221 = scalar_lea.vmem %s3, %s220
      %p222 = scmp.lt.s32.totalorder %s18, 1
      %s223 = scalar_select %p222, %s18, 1
      %p224 = scmp.lt.s32.totalorder %s19, 0
      %s225 = scalar_select %p224, %s19, 0
      %s226 = smul.addr %s223, 9
      %s227 = sadd.s32 %s225, %s226
      %s228 = smul.addr %s227, 8
      %s229 = scalar_lea.vmem %s0, %s228
      %p230 = scmp.lt.s32.totalorder %s18, 1
      %s231 = scalar_select %p230, %s18, 1
      %p232 = scmp.lt.s32.totalorder %s19, 0
      %s233 = scalar_select %p232, %s19, 0
      %s234 = sadd.s32 %s233, %s231
      %s235 = scalar_lea.vmem %s1, %s234
      %p236 = scmp.lt.s32.totalorder %s18, 1
      %s237 = scalar_select %p236, %s18, 1
      %p238 = scmp.lt.s32.totalorder %s19, 0
      %s239 = scalar_select %p238, %s19, 0
      %s240 = sadd.s32 %s239, %s237
      %s241 = scalar_lea.vmem %s2, %s240
      %p242 = scmp.lt.s32.totalorder %s18, 1
      %s243 = scalar_select %p242, %s18, 1
      %p244 = scmp.lt.s32.totalorder %s19, 0
      %s245 = scalar_select %p244, %s19, 0
      %s246 = sadd.s32 %s245, %s243
      %s247 = scalar_lea.vmem %s3, %s246
      %v248 = vld [vmem:[%s229] sm:$0xff]
      %v249 = vld [vmem:[%s229 + $0x8] sm:$0xff]
      %v250 = vld [vmem:[%s229 + $0x10] sm:$0xff]
      %v251 = vld [vmem:[%s229 + $0x18] sm:$0xff]
      %v252 = vld [vmem:[%s229 + $0x20] sm:$0xff]
      %v253 = vld [vmem:[%s229 + $0x28] sm:$0xff]
      %v254 = vld [vmem:[%s229 + $0x30] sm:$0xff]
      %v255 = vld [vmem:[%s229 + $0x38] sm:$0xff]
      %v256 = vld [vmem:[%s229 + $0x40] sm:$0x1]
      %v257 = vld [vmem:[%s235] sm:$0x1]
      %v258 = vld [vmem:[%s241] sm:$0x1]
      %v259 = vmax.f32 %v248, %v252
      %v260 = vmax.f32 %v249, %v253
      %v261 = vmax.f32 %v250, %v254
      %v262 = vmax.f32 %v251, %v255
      %vm263 = vcmask 1040384
      %v264 = vsel %vm263, %v256, -inf
      %v265 = vmax.f32 %v259, %v264
      %v266 = vmax.f32 %v265, %v260
      %v267 = vmax.f32 %v261, %v262
      %v268 = vmax.f32 %v266, %v267
      %v269 = vrot.slane %v268, 4
      %v270 = vmax.f32 %v268, %v269
      %v271 = vrot.slane %v270, 2
      %v272 = vmax.f32 %v270, %v271
      %v273 = vrot.slane %v272, 1
      %v274 = vmax.f32 %v272, %v273
      %v275 = vsub.f32 %v248, %v274
      %v276 = vsub.f32 %v249, %v274
      %v277 = vsub.f32 %v250, %v274
      %v278 = vsub.f32 %v251, %v274
      %v279 = vsub.f32 %v252, %v274
      %v280 = vsub.f32 %v253, %v274
      %v281 = vsub.f32 %v254, %v274
      %v282 = vsub.f32 %v255, %v274
      %v283 = vsub.f32 %v256, %v274
      %v284 = vmul.f32 %v275, 1.442695
      %v285 = vpow.pop %v284
      %v286 = vmul.f32 %v276, 1.442695
      %v287 = vpow.pop %v286
      %v288 = vmul.f32 %v277, 1.442695
      %v289 = vpow.pop %v288
      %v290 = vmul.f32 %v278, 1.442695
      %v291 = vpow.pop %v290
      %v292 = vmul.f32 %v279, 1.442695
      %v293 = vpow.pop %v292
      %v294 = vmul.f32 %v280, 1.442695
      %v295 = vpow.pop %v294
      %v296 = vmul.f32 %v281, 1.442695
      %v297 = vpow.pop %v296
      %v298 = vmul.f32 %v282, 1.442695
      %v299 = vpow.pop %v298
      %v300 = vmul.f32 %v283, 1.442695
      %v301 = vpow.pop %v300
      %v302 = vadd.f32 %v285, %v287
      %v303 = vadd.f32 %v302, %v289
      %v304 = vadd.f32 %v303, %v291
      %v305 = vadd.f32 %v304, %v293
      %v306 = vadd.f32 %v305, %v295
      %v307 = vadd.f32 %v306, %v297
      %v308 = vadd.f32 %v307, %v299
      %v309 = vsel %vm263, %v301, 0.0
      %v310 = vadd.f32 %v308, %v309
      %v311 = vrot.slane %v310, 4
      %v312 = vadd.f32 %v310, %v311
      %v313 = vrot.slane %v312, 2
      %v314 = vadd.f32 %v312, %v313
      %v315 = vrot.slane %v314, 1
      %v316 = vadd.f32 %v314, %v315
      %v317 = vlog2.pop %v316
      %v318 = vmul.f32 %v317, 0.6931472
      %v319 = vadd.f32 %v274, %v318
      %v320 = vlaneseq
      %v321 = vshrl.u32 %v320, 7
      %v322 = vadd.s32 %v321, 8
      %v323 = vadd.s32 %v321, 16
      %v324 = vadd.s32 %v321, 24
      %v325 = vadd.s32 %v321, 32
      %v326 = vadd.s32 %v321, 40
      %v327 = vadd.s32 %v321, 48
      %v328 = vadd.s32 %v321, 56
      %v329 = vadd.s32 %v321, 64
      %v330 = vlaneseq
      %v331 = vshrl.u32 %v330, 7
      %v332 = vsub.s32 0, %v331
      %v333 = vrot.slane %v257, %v332
      %vm334 = vcmp.eq.s32.totalorder %v321, %v333
      %vm335 = vcmp.eq.s32.totalorder %v322, %v333
      %vm336 = vcmp.eq.s32.totalorder %v323, %v333
      %vm337 = vcmp.eq.s32.totalorder %v324, %v333
      %vm338 = vcmp.eq.s32.totalorder %v325, %v333
      %vm339 = vcmp.eq.s32.totalorder %v326, %v333
      %vm340 = vcmp.eq.s32.totalorder %v327, %v333
      %vm341 = vcmp.eq.s32.totalorder %v328, %v333
      %vm342 = vcmp.eq.s32.totalorder %v329, %v333
      %v343 = vsel %vm334, %v248, 0.0
      %v344 = vsel %vm335, %v249, 0.0
      %v345 = vsel %vm336, %v250, 0.0
      %v346 = vsel %vm337, %v251, 0.0
      %v347 = vsel %vm338, %v252, 0.0
      %v348 = vsel %vm339, %v253, 0.0
      %v349 = vsel %vm340, %v254, 0.0
      %v350 = vsel %vm341, %v255, 0.0
      %v351 = vsel %vm342, %v256, 0.0
      %v352 = vadd.f32 %v343, %v344
      %v353 = vadd.f32 %v352, %v345
      %v354 = vadd.f32 %v353, %v346
      %v355 = vadd.f32 %v354, %v347
      %v356 = vadd.f32 %v355, %v348
      %v357 = vadd.f32 %v356, %v349
      %v358 = vadd.f32 %v357, %v350
      %v359 = vsel %vm263, %v351, 0.0
      %v360 = vadd.f32 %v358, %v359
      %v361 = vrot.slane %v360, 4
      %v362 = vadd.f32 %v360, %v361
      %v363 = vrot.slane %v362, 2
      %v364 = vadd.f32 %v362, %v363
      %v365 = vrot.slane %v364, 1
      %v366 = vadd.f32 %v364, %v365
      %v367 = vsub.f32 %v319, %v366
      %v368 = vmul.f32 %v367, %v258
      %v369 = vsel %vm263, %v368, 0.0
      %370 = vadd.xlane.f32.xlu0 %v369
      %v371 = vpop.xlane.xlu0 %370
      %v372 = vadd.f32 %v371, 0.0
      %373 = vst [vmem:[%s247] sm:$0x1] %v372
      %p374 = scmp.lt.s32.totalorder %s18, 1
      %s375 = scalar_select %p374, %s18, 1
      %p376 = scmp.lt.s32.totalorder %s19, 0
      %s377 = scalar_select %p376, %s19, 0
      %s378 = sadd.s32 %s377, %s375
      %s379 = scalar_lea.vmem %s3, %s378
      // Predicated region
      $region33: #{superpoint_loss.5} parent=31 // pred_check
        %p380 = pneg %p130
      $region34: #{superpoint_loss.5} parent=31 // pred_check_branch
        %382 = sbr.rel (%p380) target = $region36
      $region35: #{superpoint_loss.5} parent=31 // pred_region
        _
      $region36: #{superpoint_loss.5} parent=31 // pred_fallthru
        _
    $region32: #{superpoint_loss.5} parent=5 // pred_fallthru
      _
    %p383 = scmp.le.s32.totalorder 2, %s9
    // Predicated region
    $region37: #{superpoint_loss.5} parent=5 // pred_check
      %p384 = pneg %p383
    $region38: #{superpoint_loss.5} parent=5 // pred_check_branch
      %386 = sbr.rel (%p384) target = $region40
    $region39: #{superpoint_loss.5} parent=5 // pred_region
      %s387 = ssub.s32 %s9, 2
      // Predicated region
      $region41: #{superpoint_loss.5} parent=39 // pred_check
        %p388 = pneg %p136
      $region42: #{superpoint_loss.5} parent=39 // pred_check_branch
        %390 = sbr.rel (%p388) target = $region44
      $region43: #{superpoint_loss.5} parent=39 // pred_region
        %p391 = scmp.lt.s32.totalorder %s20, 1
        %s392 = scalar_select %p391, %s20, 1
        %p393 = scmp.lt.s32.totalorder %s21, 0
        %s394 = scalar_select %p393, %s21, 0
        %s395 = sadd.s32 %s394, %s392
        %s396 = scalar_lea.vmem %s3, %s395
      $region44: #{superpoint_loss.5} parent=39 // pred_fallthru
        _
    $region40: #{superpoint_loss.5} parent=5 // pred_fallthru
      _
  $region6: #{superpoint_loss.5} parent=0 // loop_footer
    %s13 = sadd.s32 1, %s9
  $region7: #{superpoint_loss.5} parent=0 // loop_footer_branch
    %8 = sbr.rel target = $region3
  $region8: #{superpoint_loss.5} parent=0 // loop_exit
    _

// kernel: superpoint_loss.7
$region0: #{superpoint_loss.7}
  #allocation0 [shape = 'u32[]', space=smem, size = 0x4, offset = 0x4, fixed_abs, tag = 'smem constant byte address 0x4 - core index']
  #allocation1 [shape = 'u32[144,128]{1,0:T(1,128)}', space=vmem, size = 0x12000, scoped, tag = 'internal scratch']
  %s0 = inlined_call_operand.vmem [shape: bf16[2,32,128], index: 0, kind: input, shape index: {}]
  %s1 = inlined_call_operand.vmem [shape: bf16[2,32,128], index: 1, kind: input, shape index: {}]
  %s2 = inlined_call_operand.vmem [shape: f32[2,1,128], index: 2, kind: input, shape index: {}]
  %s3 = inlined_call_operand.vmem [shape: f32[2,1,128], index: 3, kind: input, shape index: {}]
  %s4 = inlined_call_operand.vmem [shape: f32[1,128,2], index: 4, kind: input, shape index: {}]
  %s5 = inlined_call_operand.vmem [shape: f32[1,2,128], index: 5, kind: input, shape index: {}]
  %s6 = inlined_call_operand.vmem [shape: f32[2,1,1,128], index: 6, kind: output, shape index: {0}]
  %s7 = inlined_call_operand.vmem [shape: f32[2,1,1,128], index: 7, kind: output, shape index: {1}]
  %8 = xla_tuple %s6, %s7
  %s9 = sld [smem:[#allocation0]]
  $region77: #{superpoint_loss.7} parent=0
    _
  %s11 = ssub.s32 1, %s9
  %s12 = scalar_select 0, %s11, %s9
  loop: start=0, step=1, limit=4
  $region2: #{superpoint_loss.7} parent=0 // loop_pre_header
    _
  $region3: #{superpoint_loss.7} parent=0 // loop_header
    %s14 = sphi 0, %s18
    %p15 = scmp.ge.s32.totalorder %s14, 4
    %s21 = sphi 0, %s40
    %s22 = sphi 0, %s36
    %s23 = sphi 0, %s32
    %s24 = sphi 0, %s21
    %s25 = sphi 0, %s22
    %s26 = sphi 0, %s23
    %s27 = sphi 0, %s24
    %s28 = sphi 0, %s25
    %s29 = sphi 0, %s26
    %s45 = sphi 0, %s47
    %s48 = sphi 0, %s45
    %s49 = sphi 0, %s48
    %s65 = sphi 0, %s49
    %s73 = sphi 0, %s75
    %s76 = sphi 0, %s73
    %s77 = sphi 0, %s76
    %s93 = sphi 0, %s77
    %s101 = sphi 0, %s103
    %s104 = sphi 0, %s101
    %s105 = sphi 0, %s104
    %s121 = sphi 0, %s105
    %s129 = sphi 0, %s131
    %s132 = sphi 0, %s129
    %s133 = sphi 0, %s132
    %s149 = sphi 0, %s133
    %s155 = sphi 0, %s157
    %s158 = sphi 0, %s155
    %s159 = sphi 0, %s158
    %s175 = sphi 0, %s159
    %s181 = sphi 0, %s183
    %s184 = sphi 0, %s181
    %s185 = sphi 0, %s184
    %s201 = sphi 0, %s185
    %s209 = sphi 0, %s211
    %s212 = sphi 0, %s209
    %s213 = sphi 0, %s212
    %s229 = sphi 0, %s213
    %s237 = sphi 0, %s239
    %s240 = sphi 0, %s237
    %s241 = sphi 0, %s240
    %s257 = sphi 0, %s241
  $region4: #{superpoint_loss.7} parent=0 // loop_header_branch
    %17 = sbr.rel (%p15) target = $region8
  $region5: #{superpoint_loss.7} parent=0 // loop_body
    %s19 = ssub.s32 %s14, 1
    %s20 = ssub.s32 %s14, 2
    %s30 = sadd.s32 1, %s23
    %p31 = scmp.ge.s32.totalorder %s30, 1
    %s32 = scalar_select %p31, 0, %s30
    %s33 = sadd.s32 1, %s22
    %s34 = scalar_select %p31, %s33, %s22
    %p35 = scmp.ge.s32.totalorder %s34, 1
    %s36 = scalar_select %p35, 0, %s34
    %s37 = sadd.s32 1, %s21
    %s38 = scalar_select %p35, %s37, %s21
    %p39 = scmp.ge.s32.totalorder %s38, 2
    %s40 = scalar_select %p39, 0, %s38
    %s41 = ssub.s32 %s21, %s40
    %s42 = ssub.s32 %s22, %s36
    %s43 = sor.u32 %s41, %s42
    %p44 = scmp.eq.s32.totalorder %s43, 0
    %s46 = sadd.s32 %s45, 1
    %s47 = scalar_select %p44, %s45, %s46
    %p50 = pneg %p44
    %p51 = scmp.eq.s32.totalorder %s14, 1
    %p52 = por %p50, %p51
    %p53 = scmp.ne.s32.totalorder %s45, %s48
    %p54 = scmp.eq.s32.totalorder %s14, 0
    %p55 = por %p53, %p54
    %p56 = scmp.ne.s32.totalorder %s45, %s48
    %p57 = scmp.eq.s32.totalorder %s19, 1
    %p58 = por %p56, %p57
    %p59 = scmp.ne.s32.totalorder %s48, %s49
    %p60 = scmp.eq.s32.totalorder %s19, 0
    %p61 = por %p59, %p60
    %p62 = scmp.ne.s32.totalorder %s48, %s49
    %p63 = scmp.eq.s32.totalorder %s20, 1
    %p64 = por %p62, %p63
    %p66 = scmp.ne.s32.totalorder %s49, %s65
    %p67 = scmp.eq.s32.totalorder %s20, 0
    %p68 = por %p66, %p67
    %s69 = ssub.s32 %s21, %s40
    %s70 = ssub.s32 %s23, %s32
    %s71 = sor.u32 %s69, %s70
    %p72 = scmp.eq.s32.totalorder %s71, 0
    %s74 = sadd.s32 %s73, 1
    %s75 = scalar_select %p72, %s73, %s74
    %p78 = pneg %p72
    %p79 = scmp.eq.s32.totalorder %s14, 1
    %p80 = por %p78, %p79
    %p81 = scmp.ne.s32.totalorder %s73, %s76
    %p82 = scmp.eq.s32.totalorder %s14, 0
    %p83 = por %p81, %p82
    %p84 = scmp.ne.s32.totalorder %s73, %s76
    %p85 = scmp.eq.s32.totalorder %s19, 1
    %p86 = por %p84, %p85
    %p87 = scmp.ne.s32.totalorder %s76, %s77
    %p88 = scmp.eq.s32.totalorder %s19, 0
    %p89 = por %p87, %p88
    %p90 = scmp.ne.s32.totalorder %s76, %s77
    %p91 = scmp.eq.s32.totalorder %s20, 1
    %p92 = por %p90, %p91
    %p94 = scmp.ne.s32.totalorder %s77, %s93
    %p95 = scmp.eq.s32.totalorder %s20, 0
    %p96 = por %p94, %p95
    %s97 = ssub.s32 %s21, %s40
    %s98 = ssub.s32 %s22, %s36
    %s99 = sor.u32 %s97, %s98
    %p100 = scmp.eq.s32.totalorder %s99, 0
    %s102 = sadd.s32 %s101, 1
    %s103 = scalar_select %p100, %s101, %s102
    %p106 = pneg %p100
    %p107 = scmp.eq.s32.totalorder %s14, 1
    %p108 = por %p106, %p107
    %p109 = scmp.ne.s32.totalorder %s101, %s104
    %p110 = scmp.eq.s32.totalorder %s14, 0
    %p111 = por %p109, %p110
    %p112 = scmp.ne.s32.totalorder %s101, %s104
    %p113 = scmp.eq.s32.totalorder %s19, 1
    %p114 = por %p112, %p113
    %p115 = scmp.ne.s32.totalorder %s104, %s105
    %p116 = scmp.eq.s32.totalorder %s19, 0
    %p117 = por %p115, %p116
    %p118 = scmp.ne.s32.totalorder %s104, %s105
    %p119 = scmp.eq.s32.totalorder %s20, 1
    %p120 = por %p118, %p119
    %p122 = scmp.ne.s32.totalorder %s105, %s121
    %p123 = scmp.eq.s32.totalorder %s20, 0
    %p124 = por %p122, %p123
    %s125 = ssub.s32 %s21, %s40
    %s126 = ssub.s32 %s23, %s32
    %s127 = sor.u32 %s125, %s126
    %p128 = scmp.eq.s32.totalorder %s127, 0
    %s130 = sadd.s32 %s129, 1
    %s131 = scalar_select %p128, %s129, %s130
    %p134 = pneg %p128
    %p135 = scmp.eq.s32.totalorder %s14, 1
    %p136 = por %p134, %p135
    %p137 = scmp.ne.s32.totalorder %s129, %s132
    %p138 = scmp.eq.s32.totalorder %s14, 0
    %p139 = por %p137, %p138
    %p140 = scmp.ne.s32.totalorder %s129, %s132
    %p141 = scmp.eq.s32.totalorder %s19, 1
    %p142 = por %p140, %p141
    %p143 = scmp.ne.s32.totalorder %s132, %s133
    %p144 = scmp.eq.s32.totalorder %s19, 0
    %p145 = por %p143, %p144
    %p146 = scmp.ne.s32.totalorder %s132, %s133
    %p147 = scmp.eq.s32.totalorder %s20, 1
    %p148 = por %p146, %p147
    %p150 = scmp.ne.s32.totalorder %s133, %s149
    %p151 = scmp.eq.s32.totalorder %s20, 0
    %p152 = por %p150, %p151
    %s153 = ssub.s32 %s22, %s36
    %p154 = scmp.eq.s32.totalorder %s153, 0
    %s156 = sadd.s32 %s155, 1
    %s157 = scalar_select %p154, %s155, %s156
    %p160 = pneg %p154
    %p161 = scmp.eq.s32.totalorder %s14, 1
    %p162 = por %p160, %p161
    %p163 = scmp.ne.s32.totalorder %s155, %s158
    %p164 = scmp.eq.s32.totalorder %s14, 0
    %p165 = por %p163, %p164
    %p166 = scmp.ne.s32.totalorder %s155, %s158
    %p167 = scmp.eq.s32.totalorder %s19, 1
    %p168 = por %p166, %p167
    %p169 = scmp.ne.s32.totalorder %s158, %s159
    %p170 = scmp.eq.s32.totalorder %s19, 0
    %p171 = por %p169, %p170
    %p172 = scmp.ne.s32.totalorder %s158, %s159
    %p173 = scmp.eq.s32.totalorder %s20, 1
    %p174 = por %p172, %p173
    %p176 = scmp.ne.s32.totalorder %s159, %s175
    %p177 = scmp.eq.s32.totalorder %s20, 0
    %p178 = por %p176, %p177
    %s179 = ssub.s32 %s23, %s32
    %p180 = scmp.eq.s32.totalorder %s179, 0
    %s182 = sadd.s32 %s181, 1
    %s183 = scalar_select %p180, %s181, %s182
    %p186 = pneg %p180
    %p187 = scmp.eq.s32.totalorder %s14, 1
    %p188 = por %p186, %p187
    %p189 = scmp.ne.s32.totalorder %s181, %s184
    %p190 = scmp.eq.s32.totalorder %s14, 0
    %p191 = por %p189, %p190
    %p192 = scmp.ne.s32.totalorder %s181, %s184
    %p193 = scmp.eq.s32.totalorder %s19, 1
    %p194 = por %p192, %p193
    %p195 = scmp.ne.s32.totalorder %s184, %s185
    %p196 = scmp.eq.s32.totalorder %s19, 0
    %p197 = por %p195, %p196
    %p198 = scmp.ne.s32.totalorder %s184, %s185
    %p199 = scmp.eq.s32.totalorder %s20, 1
    %p200 = por %p198, %p199
    %p202 = scmp.ne.s32.totalorder %s185, %s201
    %p203 = scmp.eq.s32.totalorder %s20, 0
    %p204 = por %p202, %p203
    %s205 = ssub.s32 %s21, %s40
    %s206 = ssub.s32 %s22, %s36
    %s207 = sor.u32 %s205, %s206
    %p208 = scmp.eq.s32.totalorder %s207, 0
    %s210 = sadd.s32 %s209, 1
    %s211 = scalar_select %p208, %s209, %s210
    %p214 = pneg %p208
    %p215 = scmp.eq.s32.totalorder %s14, 1
    %p216 = por %p214, %p215
    %p217 = scmp.ne.s32.totalorder %s209, %s212
    %p218 = scmp.eq.s32.totalorder %s14, 0
    %p219 = por %p217, %p218
    %p220 = scmp.ne.s32.totalorder %s209, %s212
    %p221 = scmp.eq.s32.totalorder %s19, 1
    %p222 = por %p220, %p221
    %p223 = scmp.ne.s32.totalorder %s212, %s213
    %p224 = scmp.eq.s32.totalorder %s19, 0
    %p225 = por %p223, %p224
    %p226 = scmp.ne.s32.totalorder %s212, %s213
    %p227 = scmp.eq.s32.totalorder %s20, 1
    %p228 = por %p226, %p227
    %p230 = scmp.ne.s32.totalorder %s213, %s229
    %p231 = scmp.eq.s32.totalorder %s20, 0
    %p232 = por %p230, %p231
    %s233 = ssub.s32 %s21, %s40
    %s234 = ssub.s32 %s22, %s36
    %s235 = sor.u32 %s233, %s234
    %p236 = scmp.eq.s32.totalorder %s235, 0
    %s238 = sadd.s32 %s237, 1
    %s239 = scalar_select %p236, %s237, %s238
    %p242 = pneg %p236
    %p243 = scmp.eq.s32.totalorder %s14, 1
    %p244 = por %p242, %p243
    %p245 = scmp.ne.s32.totalorder %s237, %s240
    %p246 = scmp.eq.s32.totalorder %s14, 0
    %p247 = por %p245, %p246
    %p248 = scmp.ne.s32.totalorder %s237, %s240
    %p249 = scmp.eq.s32.totalorder %s19, 1
    %p250 = por %p248, %p249
    %p251 = scmp.ne.s32.totalorder %s240, %s241
    %p252 = scmp.eq.s32.totalorder %s19, 0
    %p253 = por %p251, %p252
    %p254 = scmp.ne.s32.totalorder %s240, %s241
    %p255 = scmp.eq.s32.totalorder %s20, 1
    %p256 = por %p254, %p255
    %p258 = scmp.ne.s32.totalorder %s241, %s257
    %p259 = scmp.eq.s32.totalorder %s20, 0
    %p260 = por %p258, %p259
    %p261 = scmp.le.s32.totalorder 1, %s14
    %p262 = scmp.lt.s32.totalorder %s14, 3
    %p263 = pnand %p261, %p262
    %p264 = pneg %p263
    // Predicated region
    $region9: #{superpoint_loss.7} parent=5 // pred_check
      _
    $region10: #{superpoint_loss.7} parent=5 // pred_check_branch
      %266 = sbr.rel (%p263) target = $region12
    $region11: #{superpoint_loss.7} parent=5 // pred_region
      %s267 = ssub.s32 %s14, 1
      // Predicated region
      $region13: #{superpoint_loss.7} parent=11 // pred_check
        %p268 = pneg %p171
      $region14: #{superpoint_loss.7} parent=11 // pred_check_branch
        %270 = sbr.rel (%p268) target = $region16
      $region15: #{superpoint_loss.7} parent=11 // pred_region
        %s271 = smul.u32 16, %s25
        %p272 = scmp.lt.s32.totalorder %s271, 15
        %s273 = scalar_select %p272, %s271, 15
        %s274 = smul.addr %s273, 8
        %s275 = scalar_lea.vmem %s4, %s274
        %s276 = smul.u32 16, %s25
      $region16: #{superpoint_loss.7} parent=11 // pred_fallthru
        _
      // Predicated region
      $region17: #{superpoint_loss.7} parent=11 // pred_check
        %p277 = pneg %p197
      $region18: #{superpoint_loss.7} parent=11 // pred_check_branch
        %279 = sbr.rel (%p277) target = $region20
      $region19: #{superpoint_loss.7} parent=11 // pred_region
        %p280 = scmp.lt.s32.totalorder %s26, 0
        %s281 = scalar_select %p280, %s26, 0
        %s282 = smul.addr %s281, 2
        %s283 = scalar_lea.vmem %s5, %s282
      $region20: #{superpoint_loss.7} parent=11 // pred_fallthru
        _
    $region12: #{superpoint_loss.7} parent=5 // pred_fallthru
      _
    %p284 = scmp.lt.s32.totalorder %s14, 2
    // Predicated region
    $region21: #{superpoint_loss.7} parent=5 // pred_check
      %p285 = pneg %p284
    $region22: #{superpoint_loss.7} parent=5 // pred_check_branch
      %287 = sbr.rel (%p285) target = $region24
    $region23: #{superpoint_loss.7} parent=5 // pred_region
      // Predicated region
      $region25: #{superpoint_loss.7} parent=23 // pred_check
        %p288 = pneg %p55
      $region26: #{superpoint_loss.7} parent=23 // pred_check_branch
        %290 = sbr.rel (%p288) target = $region28
      $region27: #{superpoint_loss.7} parent=23 // pred_region
        %p291 = scmp.lt.s32.totalorder %s21, 1
        %s292 = scalar_select %p291, %s21, 1
        %p293 = scmp.lt.s32.totalorder %s22, 0
        %s294 = scalar_select %p293, %s22, 0
        %s295 = smul.addr %s292, 4
        %s296 = sadd.s32 %s294, %s295
        %s297 = smul.addr %s296, 4
        %s298 = scalar_lea.vmem %s0, %s297
      $region28: #{superpoint_loss.7} parent=23 // pred_fallthru
        _
      // Predicated region
      $region29: #{superpoint_loss.7} parent=23 // pred_check
        %p299 = pneg %p83
      $region30: #{superpoint_loss.7} parent=23 // pred_check_branch
        %301 = sbr.rel (%p299) target = $region32
      $region31: #{superpoint_loss.7} parent=23 // pred_region
        %p302 = scmp.lt.s32.totalorder %s21, 1
        %s303 = scalar_select %p302, %s21, 1
        %p304 = scmp.lt.s32.totalorder %s23, 0
        %s305 = scalar_select %p304, %s23, 0
        %s306 = smul.addr %s303, 4
        %s307 = sadd.s32 %s305, %s306
        %s308 = smul.addr %s307, 4
        %s309 = scalar_lea.vmem %s1, %s308
      $region32: #{superpoint_loss.7} parent=23 // pred_fallthru
        _
      // Predicated region
      $region33: #{superpoint_loss.7} parent=23 // pred_check
        %p310 = pneg %p111
      $region34: #{superpoint_loss.7} parent=23 // pred_check_branch
        %312 = sbr.rel (%p310) target = $region36
      $region35: #{superpoint_loss.7} parent=23 // pred_region
        %p313 = scmp.lt.s32.totalorder %s21, 1
        %s314 = scalar_select %p313, %s21, 1
        %p315 = scmp.lt.s32.totalorder %s22, 0
        %s316 = scalar_select %p315, %s22, 0
        %s317 = sadd.s32 %s316, %s314
        %s318 = scalar_lea.vmem %s2, %s317
      $region36: #{superpoint_loss.7} parent=23 // pred_fallthru
        _
      // Predicated region
      $region37: #{superpoint_loss.7} parent=23 // pred_check
        %p319 = pneg %p139
      $region38: #{superpoint_loss.7} parent=23 // pred_check_branch
        %321 = sbr.rel (%p319) target = $region40
      $region39: #{superpoint_loss.7} parent=23 // pred_region
        %p322 = scmp.lt.s32.totalorder %s21, 1
        %s323 = scalar_select %p322, %s21, 1
        %p324 = scmp.lt.s32.totalorder %s23, 0
        %s325 = scalar_select %p324, %s23, 0
        %s326 = sadd.s32 %s325, %s323
        %s327 = scalar_lea.vmem %s3, %s326
      $region40: #{superpoint_loss.7} parent=23 // pred_fallthru
        _
    $region24: #{superpoint_loss.7} parent=5 // pred_fallthru
      _
    %p328 = scmp.le.s32.totalorder 1, %s14
    %p329 = scmp.lt.s32.totalorder %s14, 3
    %p330 = pnand %p328, %p329
    %p331 = pneg %p330
    // Predicated region
    $region41: #{superpoint_loss.7} parent=5 // pred_check
      _
    $region42: #{superpoint_loss.7} parent=5 // pred_check_branch
      %333 = sbr.rel (%p330) target = $region44
    $region43: #{superpoint_loss.7} parent=5 // pred_region
      %s334 = ssub.s32 %s14, 1
      %p335 = scmp.lt.s32.totalorder %s24, 1
      %s336 = scalar_select %p335, %s24, 1
      %p337 = scmp.lt.s32.totalorder %s25, 0
      %s338 = scalar_select %p337, %s25, 0
      %s339 = smul.addr %s336, 4
      %s340 = sadd.s32 %s338, %s339
      %s341 = smul.addr %s340, 4
      %s342 = scalar_lea.vmem %s0, %s341
      %p343 = pneg %p61
      %p344 = pneg %p58
      %p345 = scmp.lt.s32.totalorder %s24, 1
      %s346 = scalar_select %p345, %s24, 1
      %p347 = scmp.lt.s32.totalorder %s26, 0
      %s348 = scalar_select %p347, %s26, 0
      %s349 = smul.addr %s346, 4
      %s350 = sadd.s32 %s348, %s349
      %s351 = smul.addr %s350, 4
      %s352 = scalar_lea.vmem %s1, %s351
      %p353 = pneg %p89
      %p354 = pneg %p86
      %p355 = scmp.lt.s32.totalorder %s24, 1
      %s356 = scalar_select %p355, %s24, 1
      %p357 = scmp.lt.s32.totalorder %s25, 0
      %s358 = scalar_select %p357, %s25, 0
      %s359 = sadd.s32 %s358, %s356
      %s360 = scalar_lea.vmem %s2, %s359
      %p361 = pneg %p117
      %p362 = pneg %p114
      %p363 = scmp.lt.s32.totalorder %s24, 1
      %s364 = scalar_select %p363, %s24, 1
      %p365 = scmp.lt.s32.totalorder %s26, 0
      %s366 = scalar_select %p365, %s26, 0
      %s367 = sadd.s32 %s366, %s364
      %s368 = scalar_lea.vmem %s3, %s367
      %p369 = pneg %p145
      %p370 = pneg %p142
      %s371 = smul.u32 16, %s25
      %p372 = scmp.lt.s32.totalorder %s371, 15
      %s373 = scalar_select %p372, %s371, 15
      %s374 = smul.addr %s373, 8
      %s375 = scalar_lea.vmem %s4, %s374
      %p376 = pneg %p171
      %p377 = pneg %p168
      %p378 = scmp.lt.s32.totalorder %s26, 0
      %s379 = scalar_select %p378, %s26, 0
      %s380 = smul.addr %s379, 2
      %s381 = scalar_lea.vmem %s5, %s380
      %p382 = pneg %p197
      %p383 = pneg %p194
      %p384 = pneg %p225
      %p385 = pneg %p222
      %p386 = scmp.lt.s32.totalorder %s24, 1
      %s387 = scalar_select %p386, %s24, 1
      %p388 = scmp.lt.s32.totalorder %s25, 0
      %s389 = scalar_select %p388, %s25, 0
      %s390 = sadd.s32 %s389, %s387
      %s391 = scalar_lea.vmem %s6, %s390
      %p392 = pneg %p253
      %p393 = pneg %p250
      %p394 = scmp.lt.s32.totalorder %s24, 1
      %s395 = scalar_select %p394, %s24, 1
      %p396 = scmp.lt.s32.totalorder %s25, 0
      %s397 = scalar_select %p396, %s25, 0
      %s398 = sadd.s32 %s397, %s395
      %s399 = scalar_lea.vmem %s7, %s398
      %p400 = scmp.lt.s32.totalorder %s24, 1
      %s401 = scalar_select %p400, %s24, 1
      %p402 = scmp.lt.s32.totalorder %s25, 0
      %s403 = scalar_select %p402, %s25, 0
      %s404 = smul.addr %s401, 4
      %s405 = sadd.s32 %s403, %s404
      %s406 = smul.addr %s405, 4
      %s407 = scalar_lea.vmem %s0, %s406
      %p408 = scmp.lt.s32.totalorder %s24, 1
      %s409 = scalar_select %p408, %s24, 1
      %p410 = scmp.lt.s32.totalorder %s26, 0
      %s411 = scalar_select %p410, %s26, 0
      %s412 = smul.addr %s409, 4
      %s413 = sadd.s32 %s411, %s412
      %s414 = smul.addr %s413, 4
      %s415 = scalar_lea.vmem %s1, %s414
      %p416 = scmp.lt.s32.totalorder %s24, 1
      %s417 = scalar_select %p416, %s24, 1
      %p418 = scmp.lt.s32.totalorder %s25, 0
      %s419 = scalar_select %p418, %s25, 0
      %s420 = sadd.s32 %s419, %s417
      %s421 = scalar_lea.vmem %s2, %s420
      %p422 = scmp.lt.s32.totalorder %s24, 1
      %s423 = scalar_select %p422, %s24, 1
      %p424 = scmp.lt.s32.totalorder %s26, 0
      %s425 = scalar_select %p424, %s26, 0
      %s426 = sadd.s32 %s425, %s423
      %s427 = scalar_lea.vmem %s3, %s426
      %s428 = smul.u32 16, %s25
      %p429 = scmp.lt.s32.totalorder %s428, 15
      %s430 = scalar_select %p429, %s428, 15
      %s431 = smul.addr %s430, 8
      %s432 = scalar_lea.vmem %s4, %s431
      %s433 = smul.u32 16, %s25
      %p434 = scmp.lt.s32.totalorder %s26, 0
      %s435 = scalar_select %p434, %s26, 0
      %s436 = smul.addr %s435, 2
      %s437 = scalar_lea.vmem %s5, %s436
      %p438 = scmp.lt.s32.totalorder %s24, 1
      %s439 = scalar_select %p438, %s24, 1
      %p440 = scmp.lt.s32.totalorder %s25, 0
      %s441 = scalar_select %p440, %s25, 0
      %s442 = sadd.s32 %s441, %s439
      %s443 = scalar_lea.vmem %s6, %s442
      %p444 = scmp.lt.s32.totalorder %s24, 1
      %s445 = scalar_select %p444, %s24, 1
      %p446 = scmp.lt.s32.totalorder %s25, 0
      %s447 = scalar_select %p446, %s25, 0
      %s448 = sadd.s32 %s447, %s445
      %s449 = scalar_lea.vmem %s7, %s448
      %p451 = scmp.eq.s32.totalorder %s26, 0
      // Predicated region
      $region45: #{superpoint_loss.7} parent=43 // pred_check
        %p452 = pneg %p451
      $region46: #{superpoint_loss.7} parent=43 // pred_check_branch
        %454 = sbr.rel (%p452) target = $region48
      $region47: #{superpoint_loss.7} parent=43 // pred_region
        %455 = vst [vmem:[%s443] sm:$0x1] 0.0
        %456 = vst [vmem:[%s449] sm:$0x1] 0.0
      $region48: #{superpoint_loss.7} parent=43 // pred_fallthru
        _
      %v457 = vld [vmem:[%s415] sm:$0xf]
      %v458 = vld [vmem:[%s415 + $0x4] sm:$0xf]
      %v459 = vld [vmem:[%s415 + $0x8] sm:$0xf]
      %v460 = vld [vmem:[%s415 + $0xc] sm:$0xf]
      %v461 = vld [vmem:[%s407] sm:$0xf]
      %v462 = vld [vmem:[%s407 + $0x4] sm:$0xf]
      %v463 = vld [vmem:[%s407 + $0x8] sm:$0xf]
      %v464 = vld [vmem:[%s407 + $0xc] sm:$0xf]
      %v469 = vunpack.c.l.b16 %v461
      %v470 = vunpack.c.l.b16 %v462
      %v471 = vunpack.c.l.b16 %v463
      %v472 = vunpack.c.l.b16 %v464
      %v473 = vpack.c.b16 %v470, %v469
      %v474 = vpack.c.b16 %v472, %v471
      %477 = vxpose.xlu0.c.b16.start [1/8] %v473, 128
      %478 = vxpose.xlu0.c.b16.cont [2/8] %v474, 128
      %479 = vxpose.xlu0.c.b16.cont [3/8] 0, 128
      %480 = vxpose.xlu0.c.b16.cont [4/8] 0, 128
      %481 = vxpose.xlu0.c.b16.cont [5/8] 0, 128
      %482 = vxpose.xlu0.c.b16.cont [6/8] 0, 128
      %483 = vxpose.xlu0.c.b16.cont [7/8] 0, 128
      %484 = vxpose.xlu0.c.b16.end [8/8] 0, 128
      %v485 = vpop.trf.xlu0
      %v486 = vpop.trf.xlu0
      %v487 = vpop.trf.xlu0
      %v488 = vpop.trf.xlu0
      %v489 = vpop.trf.xlu0
      %v490 = vpop.trf.xlu0
      %v491 = vpop.trf.xlu0
      %v492 = vpop.trf.xlu0
      %v497 = vunpack.c.l.b16 %v457
      %v498 = vunpack.c.l.b16 %v458
      %v499 = vunpack.c.l.b16 %v459
      %v500 = vunpack.c.l.b16 %v460
      %v501 = vpack.c.b16 %v498, %v497
      %v502 = vpack.c.b16 %v500, %v499
      %vm505 = vcmask 261120
      %v507 = vsel %vm505, %v485, 0
      %v510 = vsel %vm505, %v486, 0
      %v513 = vsel %vm505, %v487, 0
      %v516 = vsel %vm505, %v488, 0
      %v519 = vsel %vm505, %v489, 0
      %v522 = vsel %vm505, %v490, 0
      %v525 = vsel %vm505, %v491, 0
      %v528 = vsel %vm505, %v492, 0
      %530 = vmatprep.subr.bf16.mxu0 0
      %531 = vmatpush1.bf16.msra.mxu0 %v501
      %532 = vmatprep.subr.bf16.mxu0 0
      %533 = vmatpush1.bf16.msra.mxu0 %v502
      %534 = vmatprep.subr.bf16.mxu0 0
      %535 = vmatpush1.bf16.msra.mxu0 0
      %536 = vmatprep.subr.bf16.mxu0 0
      %537 = vmatpush1.bf16.msra.mxu0 0
      %538 = vmatprep.subr.bf16.mxu0 0
      %539 = vmatpush1.bf16.msra.mxu0 0
      %540 = vmatprep.subr.bf16.mxu0 0
      %541 = vmatpush1.bf16.msra.mxu0 0
      %542 = vmatprep.subr.bf16.mxu0 0
      %543 = vmatpush1.bf16.msra.mxu0 0
      %544 = vmatprep.subr.bf16.mxu0 0
      %545 = vmatpush1.bf16.msra.mxu0 0
      %546 = vmatprep.subr.bf16.mxu0 0
      %547 = vmatpush1.bf16.msra.mxu0 0
      %548 = vmatprep.subr.bf16.mxu0 0
      %549 = vmatpush1.bf16.msra.mxu0 0
      %550 = vmatprep.subr.bf16.mxu0 0
      %551 = vmatpush1.bf16.msra.mxu0 0
      %552 = vmatprep.subr.bf16.mxu0 0
      %553 = vmatpush1.bf16.msra.mxu0 0
      %554 = vmatprep.subr.bf16.mxu0 0
      %555 = vmatpush1.bf16.msra.mxu0 0
      %556 = vmatprep.subr.bf16.mxu0 0
      %557 = vmatpush1.bf16.msra.mxu0 0
      %558 = vmatprep.subr.bf16.mxu0 0
      %559 = vmatpush1.bf16.msra.mxu0 0
      %560 = vmatprep.subr.bf16.mxu0 0
      %561 = vmatpush1.bf16.msra.mxu0 0
      %562 = vmatprep.mubr.bf16.mxu0 0
      %563 = vmatmul.mubr.bf16.gmra.mrb[0].mxu0 %v507
      %v564 = vpop.f32.mrb[0].mxu0
      %v565 = vadd.f32 0.0, %v564
      %v566 = vpop.f32.mrb[0].mxu0
      %v567 = vpop.f32.mrb[0].mxu0
      %v568 = vadd.f32 0.0, %v567
      %v569 = vpop.f32.mrb[0].mxu0
      %570 = vmatprep.mubr.bf16.mxu0 0
      %571 = vmatmul.mubr.bf16.gmra.mrb[0].mxu0 %v510
      %v572 = vpop.f32.mrb[0].mxu0
      %v573 = vadd.f32 0.0, %v572
      %v574 = vpop.f32.mrb[0].mxu0
      %v575 = vpop.f32.mrb[0].mxu0
      %v576 = vadd.f32 0.0, %v575
      %v577 = vpop.f32.mrb[0].mxu0
      %578 = vmatprep.mubr.bf16.mxu0 0
      %579 = vmatmul.mubr.bf16.gmra.mrb[0].mxu0 %v513
      %v580 = vpop.f32.mrb[0].mxu0
      %v581 = vadd.f32 0.0, %v580
      %v582 = vpop.f32.mrb[0].mxu0
      %v583 = vpop.f32.mrb[0].mxu0
      %v584 = vadd.f32 0.0, %v583
      %v585 = vpop.f32.mrb[0].mxu0
      %586 = vmatprep.mubr.bf16.mxu0 0
      %587 = vmatmul.mubr.bf16.gmra.mrb[0].mxu0 %v516
      %v588 = vpop.f32.mrb[0].mxu0
      %v589 = vadd.f32 0.0, %v588
      %v590 = vpop.f32.mrb[0].mxu0
      %v591 = vpop.f32.mrb[0].mxu0
      %v592 = vadd.f32 0.0, %v591
      %v593 = vpop.f32.mrb[0].mxu0
      %594 = vmatprep.mubr.bf16.mxu0 0
      %595 = vmatmul.mubr.bf16.gmra.mrb[0].mxu0 %v519
      %v596 = vpop.f32.mrb[0].mxu0
      %v597 = vadd.f32 0.0, %v596
      %v598 = vpop.f32.mrb[0].mxu0
      %v599 = vpop.f32.mrb[0].mxu0
      %v600 = vadd.f32 0.0, %v599
      %v601 = vpop.f32.mrb[0].mxu0
      %602 = vmatprep.mubr.bf16.mxu0 0
      %603 = vmatmul.mubr.bf16.gmra.mrb[0].mxu0 %v522
      %v604 = vpop.f32.mrb[0].mxu0
      %v605 = vadd.f32 0.0, %v604
      %v606 = vpop.f32.mrb[0].mxu0
      %v607 = vpop.f32.mrb[0].mxu0
      %v608 = vadd.f32 0.0, %v607
      %v609 = vpop.f32.mrb[0].mxu0
      %610 = vmatprep.mubr.bf16.mxu0 0
      %611 = vmatmul.mubr.bf16.gmra.mrb[0].mxu0 %v525
      %v612 = vpop.f32.mrb[0].mxu0
      %v613 = vadd.f32 0.0, %v612
      %v614 = vpop.f32.mrb[0].mxu0
      %v615 = vpop.f32.mrb[0].mxu0
      %v616 = vadd.f32 0.0, %v615
      %v617 = vpop.f32.mrb[0].mxu0
      %618 = vmatprep.mubr.bf16.mxu0 0
      %619 = vmatmul.mubr.bf16.gmra.mrb[0].mxu0 %v528
      %v620 = vpop.f32.mrb[0].mxu0
      %v621 = vadd.f32 0.0, %v620
      %v622 = vpop.f32.mrb[0].mxu0
      %v623 = vpop.f32.mrb[0].mxu0
      %v624 = vadd.f32 0.0, %v623
      %v625 = vpop.f32.mrb[0].mxu0
      %626 = vdwg.mxu0
      %v627 = vld [vmem:[%s421] sm:$0x1]
      %v628 = vld [vmem:[%s427] sm:$0x1]
      %s629 = smul.u32 %s25, 128
      %s630 = smul.u32 %s26, 128
      %s631 = sadd.s32 %s629, 127
      %s632 = ssub.s32 %s630, %s631
      %s633 = sadd.s32 %s630, 127
      %s634 = ssub.s32 %s629, %s633
      %p635 = scmp.gt.s32.totalorder %s632, %s634
      %s636 = scalar_select %p635, %s632, %s634
      %p637 = scmp.le.s32.totalorder %s636, 3
      // Predicated region
      $region49: #{superpoint_loss.7} parent=43 // pred_check
        %p638 = pneg %p637
      $region50: #{superpoint_loss.7} parent=43 // pred_check_branch
        %640 = sbr.rel (%p638) target = $region52
      $region51: #{superpoint_loss.7} parent=43 // pred_region
        %v641 = vld [vmem:[%s432] sm:$0xff]
        %v642 = vld [vmem:[%s432 + $0x8] sm:$0xff]
        %v643 = vld [vmem:[%s432 + $0x10] sm:$0xff]
        %v644 = vld [vmem:[%s432 + $0x18] sm:$0xff]
        %v645 = vld [vmem:[%s432 + $0x20] sm:$0xff]
        %v646 = vld [vmem:[%s432 + $0x28] sm:$0xff]
        %v647 = vld [vmem:[%s432 + $0x30] sm:$0xff]
        %v648 = vld [vmem:[%s432 + $0x38] sm:$0xff]
        %v649 = vld [vmem:[%s432 + $0x40] sm:$0xff]
        %v650 = vld [vmem:[%s432 + $0x48] sm:$0xff]
        %v651 = vld [vmem:[%s432 + $0x50] sm:$0xff]
        %v652 = vld [vmem:[%s432 + $0x58] sm:$0xff]
        %v653 = vld [vmem:[%s432 + $0x60] sm:$0xff]
        %v654 = vld [vmem:[%s432 + $0x68] sm:$0xff]
        %v655 = vld [vmem:[%s432 + $0x70] sm:$0xff]
        %v656 = vld [vmem:[%s432 + $0x78] sm:$0xff]
        %v657 = vld [vmem:[%s437] sm:$0x3]
        %659 = vset.pattern.permute.xlu0 0
        %660 = vperm.xlu0 %659, %v641
        %v661 = vpop.permute.xlu0 %660
        %664 = vset.pattern.permute.xlu0 0
        %665 = vperm.xlu0 %664, %v642
        %v666 = vpop.permute.xlu0 %665
        %669 = vset.pattern.permute.xlu0 0
        %670 = vperm.xlu0 %669, %v643
        %v671 = vpop.permute.xlu0 %670
        %674 = vset.pattern.permute.xlu0 0
        %675 = vperm.xlu0 %674, %v644
        %v676 = vpop.permute.xlu0 %675
        %679 = vset.pattern.permute.xlu0 0
        %680 = vperm.xlu0 %679, %v645
        %v681 = vpop.permute.xlu0 %680
        %684 = vset.pattern.permute.xlu0 0
        %685 = vperm.xlu0 %684, %v646
        %v686 = vpop.permute.xlu0 %685
        %689 = vset.pattern.permute.xlu0 0
        %690 = vperm.xlu0 %689, %v647
        %v691 = vpop.permute.xlu0 %690
        %694 = vset.pattern.permute.xlu0 0
        %695 = vperm.xlu0 %694, %v648
        %v696 = vpop.permute.xlu0 %695
        %699 = vset.pattern.permute.xlu0 0
        %700 = vperm.xlu0 %699, %v649
        %v701 = vpop.permute.xlu0 %700
        %704 = vset.pattern.permute.xlu0 0
        %705 = vperm.xlu0 %704, %v650
        %v706 = vpop.permute.xlu0 %705
        %709 = vset.pattern.permute.xlu0 0
        %710 = vperm.xlu0 %709, %v651
        %v711 = vpop.permute.xlu0 %710
        %714 = vset.pattern.permute.xlu0 0
        %715 = vperm.xlu0 %714, %v652
        %v716 = vpop.permute.xlu0 %715
        %719 = vset.pattern.permute.xlu0 0
        %720 = vperm.xlu0 %719, %v653
        %v721 = vpop.permute.xlu0 %720
        %724 = vset.pattern.permute.xlu0 0
        %725 = vperm.xlu0 %724, %v654
        %v726 = vpop.permute.xlu0 %725
        %729 = vset.pattern.permute.xlu0 0
        %730 = vperm.xlu0 %729, %v655
        %v731 = vpop.permute.xlu0 %730
        %734 = vset.pattern.permute.xlu0 0
        %735 = vperm.xlu0 %734, %v656
        %v736 = vpop.permute.xlu0 %735
        %v738 = vlaneseq
        %v739 = vshrl.u32 %v738, 7
        %v740 = vsub.s32 0, %v739
        %v741 = vrot.slane %v657, %v740
        %v742 = vsub.f32 %v661, %v741
        %v743 = vsub.f32 %v666, %v741
        %v744 = vsub.f32 %v671, %v741
        %v745 = vsub.f32 %v676, %v741
        %v746 = vsub.f32 %v681, %v741
        %v747 = vsub.f32 %v686, %v741
        %v748 = vsub.f32 %v691, %v741
        %v749 = vsub.f32 %v696, %v741
        %v750 = vsub.f32 %v701, %v741
        %v751 = vsub.f32 %v706, %v741
        %v752 = vsub.f32 %v711, %v741
        %v753 = vsub.f32 %v716, %v741
        %v754 = vsub.f32 %v721, %v741
        %v755 = vsub.f32 %v726, %v741
        %v756 = vsub.f32 %v731, %v741
        %v757 = vsub.f32 %v736, %v741
        %758 = vset.pattern.permute.xlu0 1
        %759 = vperm.xlu0 %758, %v641
        %v760 = vpop.permute.xlu0 %759
        %762 = vset.pattern.permute.xlu0 1
        %763 = vperm.xlu0 %762, %v642
        %v764 = vpop.permute.xlu0 %763
        %766 = vset.pattern.permute.xlu0 1
        %767 = vperm.xlu0 %766, %v643
        %v768 = vpop.permute.xlu0 %767
        %770 = vset.pattern.permute.xlu0 1
        %771 = vperm.xlu0 %770, %v644
        %v772 = vpop.permute.xlu0 %771
        %774 = vset.pattern.permute.xlu0 1
        %775 = vperm.xlu0 %774, %v645
        %v776 = vpop.permute.xlu0 %775
        %778 = vset.pattern.permute.xlu0 1
        %779 = vperm.xlu0 %778, %v646
        %v780 = vpop.permute.xlu0 %779
        %782 = vset.pattern.permute.xlu0 1
        %783 = vperm.xlu0 %782, %v647
        %v784 = vpop.permute.xlu0 %783
        %786 = vset.pattern.permute.xlu0 1
        %787 = vperm.xlu0 %786, %v648
        %v788 = vpop.permute.xlu0 %787
        %790 = vset.pattern.permute.xlu0 1
        %791 = vperm.xlu0 %790, %v649
        %v792 = vpop.permute.xlu0 %791
        %794 = vset.pattern.permute.xlu0 1
        %795 = vperm.xlu0 %794, %v650
        %v796 = vpop.permute.xlu0 %795
        %798 = vset.pattern.permute.xlu0 1
        %799 = vperm.xlu0 %798, %v651
        %v800 = vpop.permute.xlu0 %799
        %802 = vset.pattern.permute.xlu0 1
        %803 = vperm.xlu0 %802, %v652
        %v804 = vpop.permute.xlu0 %803
        %806 = vset.pattern.permute.xlu0 1
        %807 = vperm.xlu0 %806, %v653
        %v808 = vpop.permute.xlu0 %807
        %810 = vset.pattern.permute.xlu0 1
        %811 = vperm.xlu0 %810, %v654
        %v812 = vpop.permute.xlu0 %811
        %814 = vset.pattern.permute.xlu0 1
        %815 = vperm.xlu0 %814, %v655
        %v816 = vpop.permute.xlu0 %815
        %818 = vset.pattern.permute.xlu0 1
        %819 = vperm.xlu0 %818, %v656
        %v820 = vpop.permute.xlu0 %819
        %v822 = vlaneseq
        %v823 = vshrl.u32 %v822, 7
        %v824 = vsub.s32 1, %v823
        %v825 = vrot.slane %v657, %v824
        %v826 = vsub.f32 %v760, %v825
        %v827 = vsub.f32 %v764, %v825
        %v828 = vsub.f32 %v768, %v825
        %v829 = vsub.f32 %v772, %v825
        %v830 = vsub.f32 %v776, %v825
        %v831 = vsub.f32 %v780, %v825
        %v832 = vsub.f32 %v784, %v825
        %v833 = vsub.f32 %v788, %v825
        %v834 = vsub.f32 %v792, %v825
        %v835 = vsub.f32 %v796, %v825
        %v836 = vsub.f32 %v800, %v825
        %v837 = vsub.f32 %v804, %v825
        %v838 = vsub.f32 %v808, %v825
        %v839 = vsub.f32 %v812, %v825
        %v840 = vsub.f32 %v816, %v825
        %v841 = vsub.f32 %v820, %v825
        %v842 = vmul.f32 %v742, %v742
        %v843 = vmul.f32 %v743, %v743
        %v844 = vmul.f32 %v744, %v744
        %v845 = vmul.f32 %v745, %v745
        %v846 = vmul.f32 %v746, %v746
        %v847 = vmul.f32 %v747, %v747
        %v848 = vmul.f32 %v748, %v748
        %v849 = vmul.f32 %v749, %v749
        %v850 = vmul.f32 %v750, %v750
        %v851 = vmul.f32 %v751, %v751
        %v852 = vmul.f32 %v752, %v752
        %v853 = vmul.f32 %v753, %v753
        %v854 = vmul.f32 %v754, %v754
        %v855 = vmul.f32 %v755, %v755
        %v856 = vmul.f32 %v756, %v756
        %v857 = vmul.f32 %v757, %v757
        %v858 = vmul.f32 %v826, %v826
        %v859 = vmul.f32 %v827, %v827
        %v860 = vmul.f32 %v828, %v828
        %v861 = vmul.f32 %v829, %v829
        %v862 = vmul.f32 %v830, %v830
        %v863 = vmul.f32 %v831, %v831
        %v864 = vmul.f32 %v832, %v832
        %v865 = vmul.f32 %v833, %v833
        %v866 = vmul.f32 %v834, %v834
        %v867 = vmul.f32 %v835, %v835
        %v868 = vmul.f32 %v836, %v836
        %v869 = vmul.f32 %v837, %v837
        %v870 = vmul.f32 %v838, %v838
        %v871 = vmul.f32 %v839, %v839
        %v872 = vmul.f32 %v840, %v840
        %v873 = vmul.f32 %v841, %v841
        %v874 = vadd.f32 %v842, %v858
        %v875 = vadd.f32 %v843, %v859
        %v876 = vadd.f32 %v844, %v860
        %v877 = vadd.f32 %v845, %v861
        %v878 = vadd.f32 %v846, %v862
        %v879 = vadd.f32 %v847, %v863
        %v880 = vadd.f32 %v848, %v864
        %v881 = vadd.f32 %v849, %v865
        %v882 = vadd.f32 %v850, %v866
        %v883 = vadd.f32 %v851, %v867
        %v884 = vadd.f32 %v852, %v868
        %v885 = vadd.f32 %v853, %v869
        %v886 = vadd.f32 %v854, %v870
        %v887 = vadd.f32 %v855, %v871
        %v888 = vadd.f32 %v856, %v872
        %v889 = vadd.f32 %v857, %v873
        %vm890 = vcmp.le.f32.partialorder %v874, 1.0
        %vm891 = vcmp.le.f32.partialorder %v875, 1.0
        %vm892 = vcmp.le.f32.partialorder %v876, 1.0
        %vm893 = vcmp.le.f32.partialorder %v877, 1.0
        %vm894 = vcmp.le.f32.partialorder %v878, 1.0
        %vm895 = vcmp.le.f32.partialorder %v879, 1.0
        %vm896 = vcmp.le.f32.partialorder %v880, 1.0
        %vm897 = vcmp.le.f32.partialorder %v881, 1.0
        %vm898 = vcmp.le.f32.partialorder %v882, 1.0
        %vm899 = vcmp.le.f32.partialorder %v883, 1.0
        %vm900 = vcmp.le.f32.partialorder %v884, 1.0
        %vm901 = vcmp.le.f32.partialorder %v885, 1.0
        %vm902 = vcmp.le.f32.partialorder %v886, 1.0
        %vm903 = vcmp.le.f32.partialorder %v887, 1.0
        %vm904 = vcmp.le.f32.partialorder %v888, 1.0
        %vm905 = vcmp.le.f32.partialorder %v889, 1.0
        %v906 = vsub.f32 1.0, %v565
        %v907 = vsub.f32 1.0, %v568
        %v908 = vsub.f32 1.0, %v573
        %v909 = vsub.f32 1.0, %v576
        %v910 = vsub.f32 1.0, %v581
        %v911 = vsub.f32 1.0, %v584
        %v912 = vsub.f32 1.0, %v589
        %v913 = vsub.f32 1.0, %v592
        %v914 = vsub.f32 1.0, %v597
        %v915 = vsub.f32 1.0, %v600
        %v916 = vsub.f32 1.0, %v605
        %v917 = vsub.f32 1.0, %v608
        %v918 = vsub.f32 1.0, %v613
        %v919 = vsub.f32 1.0, %v616
        %v920 = vsub.f32 1.0, %v621
        %v921 = vsub.f32 1.0, %v624
        %v922 = vmax.f32 %v906, 0.0
        %v923 = vmax.f32 %v907, 0.0
        %v924 = vmax.f32 %v908, 0.0
        %v925 = vmax.f32 %v909, 0.0
        %v926 = vmax.f32 %v910, 0.0
        %v927 = vmax.f32 %v911, 0.0
        %v928 = vmax.f32 %v912, 0.0
        %v929 = vmax.f32 %v913, 0.0
        %v930 = vmax.f32 %v914, 0.0
        %v931 = vmax.f32 %v915, 0.0
        %v932 = vmax.f32 %v916, 0.0
        %v933 = vmax.f32 %v917, 0.0
        %v934 = vmax.f32 %v918, 0.0
        %v935 = vmax.f32 %v919, 0.0
        %v936 = vmax.f32 %v920, 0.0
        %v937 = vmax.f32 %v921, 0.0
        %v938 = vsel %vm890, %v922, 0.0
        %v939 = vsel %vm891, %v923, 0.0
        %v940 = vsel %vm892, %v924, 0.0
        %v941 = vsel %vm893, %v925, 0.0
        %v942 = vsel %vm894, %v926, 0.0
        %v943 = vsel %vm895, %v927, 0.0
        %v944 = vsel %vm896, %v928, 0.0
        %v945 = vsel %vm897, %v929, 0.0
        %v946 = vsel %vm898, %v930, 0.0
        %v947 = vsel %vm899, %v931, 0.0
        %v948 = vsel %vm900, %v932, 0.0
        %v949 = vsel %vm901, %v933, 0.0
        %v950 = vsel %vm902, %v934, 0.0
        %v951 = vsel %vm903, %v935, 0.0
        %v952 = vsel %vm904, %v936, 0.0
        %v953 = vsel %vm905, %v937, 0.0
        %v954 = vsub.f32 %v565, 0.2
        %v955 = vsub.f32 %v568, 0.2
        %v956 = vsub.f32 %v573, 0.2
        %v957 = vsub.f32 %v576, 0.2
        %v958 = vsub.f32 %v581, 0.2
        %v959 = vsub.f32 %v584, 0.2
        %v960 = vsub.f32 %v589, 0.2
        %v961 = vsub.f32 %v592, 0.2
        %v962 = vsub.f32 %v597, 0.2
        %v963 = vsub.f32 %v600, 0.2
        %v964 = vsub.f32 %v605, 0.2
        %v965 = vsub.f32 %v608, 0.2
        %v966 = vsub.f32 %v613, 0.2
        %v967 = vsub.f32 %v616, 0.2
        %v968 = vsub.f32 %v621, 0.2
        %v969 = vsub.f32 %v624, 0.2
        %v970 = vmax.f32 %v954, 0.0
        %v971 = vmax.f32 %v955, 0.0
        %v972 = vmax.f32 %v956, 0.0
        %v973 = vmax.f32 %v957, 0.0
        %v974 = vmax.f32 %v958, 0.0
        %v975 = vmax.f32 %v959, 0.0
        %v976 = vmax.f32 %v960, 0.0
        %v977 = vmax.f32 %v961, 0.0
        %v978 = vmax.f32 %v962, 0.0
        %v979 = vmax.f32 %v963, 0.0
        %v980 = vmax.f32 %v964, 0.0
        %v981 = vmax.f32 %v965, 0.0
        %v982 = vmax.f32 %v966, 0.0
        %v983 = vmax.f32 %v967, 0.0
        %v984 = vmax.f32 %v968, 0.0
        %v985 = vmax.f32 %v969, 0.0
        %v986 = vsel %vm890, 0.0, %v970
        %v987 = vsel %vm891, 0.0, %v971
        %v988 = vsel %vm892, 0.0, %v972
        %v989 = vsel %vm893, 0.0, %v973
        %v990 = vsel %vm894, 0.0, %v974
        %v991 = vsel %vm895, 0.0, %v975
        %v992 = vsel %vm896, 0.0, %v976
        %v993 = vsel %vm897, 0.0, %v977
        %v994 = vsel %vm898, 0.0, %v978
        %v995 = vsel %vm899, 0.0, %v979
        %v996 = vsel %vm900, 0.0, %v980
        %v997 = vsel %vm901, 0.0, %v981
        %v998 = vsel %vm902, 0.0, %v982
        %v999 = vsel %vm903, 0.0, %v983
        %v1000 = vsel %vm904, 0.0, %v984
        %v1001 = vsel %vm905, 0.0, %v985
        %v1002 = vld [vmem:[%s443] sm:$0x1]
        %1003 = vmatprep.subr.mxu0 0.0
        %1004 = vmatpush1.msra.mxu0 %v938
        %1005 = vmatprep.subr.mxu0 0.0
        %1006 = vmatpush1.msra.mxu0 %v939
        %1007 = vmatprep.subr.mxu0 0.0
        %1008 = vmatpush1.msra.mxu0 %v940
        %1009 = vmatprep.subr.mxu0 0.0
        %1010 = vmatpush1.msra.mxu0 %v941
        %1011 = vmatprep.subr.mxu0 0.0
        %1012 = vmatpush1.msra.mxu0 %v942
        %1013 = vmatprep.subr.mxu0 0.0
        %1014 = vmatpush1.msra.mxu0 %v943
        %1015 = vmatprep.subr.mxu0 0.0
        %1016 = vmatpush1.msra.mxu0 %v944
        %1017 = vmatprep.subr.mxu0 0.0
        %1018 = vmatpush1.msra.mxu0 %v945
        %1019 = vmatprep.subr.mxu0 0.0
        %1020 = vmatpush1.msra.mxu0 %v946
        %1021 = vmatprep.subr.mxu0 0.0
        %1022 = vmatpush1.msra.mxu0 %v947
        %1023 = vmatprep.subr.mxu0 0.0
        %1024 = vmatpush1.msra.mxu0 %v948
        %1025 = vmatprep.subr.mxu0 0.0
        %1026 = vmatpush1.msra.mxu0 %v949
        %1027 = vmatprep.subr.mxu0 0.0
        %1028 = vmatpush1.msra.mxu0 %v950
        %1029 = vmatprep.subr.mxu0 0.0
        %1030 = vmatpush1.msra.mxu0 %v951
        %1031 = vmatprep.subr.mxu0 0.0
        %1032 = vmatpush1.msra.mxu0 %v952
        %1033 = vmatprep.subr.mxu0 0.0
        %1034 = vmatpush1.msra.mxu0 %v953
        %1035 = vmatprep.subr.mxu0 0.0
        %1036 = vmatpush1.msra.mxu0 0.0
        %1037 = vmatprep.subr.mxu0 0.0
        %1038 = vmatpush1.msra.mxu0 0.0
        %1039 = vmatprep.subr.mxu0 0.0
        %1040 = vmatpush1.msra.mxu0 0.0
        %1041 = vmatprep.subr.mxu0 0.0
        %1042 = vmatpush1.msra.mxu0 0.0
        %1043 = vmatprep.subr.mxu0 0.0
        %1044 = vmatpush1.msra.mxu0 0.0
        %1045 = vmatprep.subr.mxu0 0.0
        %1046 = vmatpush1.msra.mxu0 0.0
        %1047 = vmatprep.subr.mxu0 0.0
        %1048 = vmatpush1.msra.mxu0 0.0
        %1049 = vmatprep.subr.mxu0 0.0
        %1050 = vmatpush1.msra.mxu0 0.0
        %1051 = vmatprep.subr.mxu0 0.0
        %1052 = vmatpush1.msra.mxu0 0.0
        %1053 = vmatprep.subr.mxu0 0.0
        %1054 = vmatpush1.msra.mxu0 0.0
        %1055 = vmatprep.subr.mxu0 0.0
        %1056 = vmatpush1.msra.mxu0 0.0
        %1057 = vmatprep.subr.mxu0 0.0
        %1058 = vmatpush1.msra.mxu0 0.0
        %1059 = vmatprep.subr.mxu0 0.0
        %1060 = vmatpush1.msra.mxu0 0.0
        %1061 = vmatprep.subr.mxu0 0.0
        %1062 = vmatpush1.msra.mxu0 0.0
        %1063 = vmatprep.subr.mxu0 0.0
        %1064 = vmatpush1.msra.mxu0 0.0
        %1065 = vmatprep.subr.mxu0 0.0
        %1066 = vmatpush1.msra.mxu0 0.0
        %1067 = vmatprep.mubr.f32.mxu0 0.0
        %1068 = vmatmul.mubr.f32.gmra.mrb[0].mxu0 %v627
        %v1069 = vpop.f32.mrb[0].mxu0
        %v1070 = vadd.f32 0.0, %v1069
        %v1071 = vpop.f32.mrb[0].mxu0
        %1072 = vdwg.mxu0
        %v1073 = vmul.f32 %v1070, %v628
        %vm1074 = vcmask 1040384
        %v1075 = vsel %vm1074, %v1073, 0.0
        %1076 = vadd.xlane.f32.xlu0 %v1075
        %v1077 = vpop.xlane.xlu0 %1076
        %v1078 = vadd.f32 %v1002, %v1077
        %1079 = vst [vmem:[%s443] sm:$0x1] %v1078
        %v1080 = vld [vmem:[%s449] sm:$0x1]
        %1081 = vmatprep.subr.mxu0 0.0
        %1082 = vmatpush1.msra.mxu0 %v986
        %1083 = vmatprep.subr.mxu0 0.0
        %1084 = vmatpush1.msra.mxu0 %v987
        %1085 = vmatprep.subr.mxu0 0.0
        %1086 = vmatpush1.msra.mxu0 %v988
        %1087 = vmatprep.subr.mxu0 0.0
        %1088 = vmatpush1.msra.mxu0 %v989
        %1089 = vmatprep.subr.mxu0 0.0
        %1090 = vmatpush1.msra.mxu0 %v990
        %1091 = vmatprep.subr.mxu0 0.0
        %1092 = vmatpush1.msra.mxu0 %v991
        %1093 = vmatprep.subr.mxu0 0.0
        %1094 = vmatpush1.msra.mxu0 %v992
        %1095 = vmatprep.subr.mxu0 0.0
        %1096 = vmatpush1.msra.mxu0 %v993
        %1097 = vmatprep.subr.mxu0 0.0
        %1098 = vmatpush1.msra.mxu0 %v994
        %1099 = vmatprep.subr.mxu0 0.0
        %1100 = vmatpush1.msra.mxu0 %v995
        %1101 = vmatprep.subr.mxu0 0.0
        %1102 = vmatpush1.msra.mxu0 %v996
        %1103 = vmatprep.subr.mxu0 0.0
        %1104 = vmatpush1.msra.mxu0 %v997
        %1105 = vmatprep.subr.mxu0 0.0
        %1106 = vmatpush1.msra.mxu0 %v998
        %1107 = vmatprep.subr.mxu0 0.0
        %1108 = vmatpush1.msra.mxu0 %v999
        %1109 = vmatprep.subr.mxu0 0.0
        %1110 = vmatpush1.msra.mxu0 %v1000
        %1111 = vmatprep.subr.mxu0 0.0
        %1112 = vmatpush1.msra.mxu0 %v1001
        %1113 = vmatprep.subr.mxu0 0.0
        %1114 = vmatpush1.msra.mxu0 0.0
        %1115 = vmatprep.subr.mxu0 0.0
        %1116 = vmatpush1.msra.mxu0 0.0
        %1117 = vmatprep.subr.mxu0 0.0
        %1118 = vmatpush1.msra.mxu0 0.0
        %1119 = vmatprep.subr.mxu0 0.0
        %1120 = vmatpush1.msra.mxu0 0.0
        %1121 = vmatprep.subr.mxu0 0.0
        %1122 = vmatpush1.msra.mxu0 0.0
        %1123 = vmatprep.subr.mxu0 0.0
        %1124 = vmatpush1.msra.mxu0 0.0
        %1125 = vmatprep.subr.mxu0 0.0
        %1126 = vmatpush1.msra.mxu0 0.0
        %1127 = vmatprep.subr.mxu0 0.0
        %1128 = vmatpush1.msra.mxu0 0.0
        %1129 = vmatprep.subr.mxu0 0.0
        %1130 = vmatpush1.msra.mxu0 0.0
        %1131 = vmatprep.subr.mxu0 0.0
        %1132 = vmatpush1.msra.mxu0 0.0
        %1133 = vmatprep.subr.mxu0 0.0
        %1134 = vmatpush1.msra.mxu0 0.0
        %1135 = vmatprep.subr.mxu0 0.0
        %1136 = vmatpush1.msra.mxu0 0.0
        %1137 = vmatprep.subr.mxu0 0.0
        %1138 = vmatpush1.msra.mxu0 0.0
        %1139 = vmatprep.subr.mxu0 0.0
        %1140 = vmatpush1.msra.mxu0 0.0
        %1141 = vmatprep.subr.mxu0 0.0
        %1142 = vmatpush1.msra.mxu0 0.0
        %1143 = vmatprep.subr.mxu0 0.0
        %1144 = vmatpush1.msra.mxu0 0.0
        %1145 = vmatprep.mubr.f32.mxu0 0.0
        %1146 = vmatmul.mubr.f32.gmra.mrb[0].mxu0 %v627
        %v1147 = vpop.f32.mrb[0].mxu0
        %v1148 = vadd.f32 0.0, %v1147
        %v1149 = vpop.f32.mrb[0].mxu0
        %1150 = vdwg.mxu0
        %v1151 = vmul.f32 %v1148, %v628
        %v1152 = vsel %vm1074, %v1151, 0.0
        %1153 = vadd.xlane.f32.xlu0 %v1152
        %v1154 = vpop.xlane.xlu0 %1153
        %v1155 = vadd.f32 %v1080, %v1154
        %1156 = vst [vmem:[%s449] sm:$0x1] %v1155
      $region52: #{superpoint_loss.7} parent=43 // pred_fallthru
        _
      %p1157 = scmp.gt.s32.totalorder %s636, 3
      // Predicated region
      $region53: #{superpoint_loss.7} parent=43 // pred_check
        %p1158 = pneg %p1157
      $region54: #{superpoint_loss.7} parent=43 // pred_check_branch
        %1160 = sbr.rel (%p1158) target = $region56
      $region55: #{superpoint_loss.7} parent=43 // pred_region
        %v1161 = vsub.f32 %v565, 0.2
        %v1162 = vsub.f32 %v568, 0.2
        %v1163 = vsub.f32 %v573, 0.2
        %v1164 = vsub.f32 %v576, 0.2
        %v1165 = vsub.f32 %v581, 0.2
        %v1166 = vsub.f32 %v584, 0.2
        %v1167 = vsub.f32 %v589, 0.2
        %v1168 = vsub.f32 %v592, 0.2
        %v1169 = vsub.f32 %v597, 0.2
        %v1170 = vsub.f32 %v600, 0.2
        %v1171 = vsub.f32 %v605, 0.2
        %v1172 = vsub.f32 %v608, 0.2
        %v1173 = vsub.f32 %v613, 0.2
        %v1174 = vsub.f32 %v616, 0.2
        %v1175 = vsub.f32 %v621, 0.2
        %v1176 = vsub.f32 %v624, 0.2
        %v1177 = vmax.f32 %v1161, 0.0
        %v1178 = vmax.f32 %v1162, 0.0
        %v1179 = vmax.f32 %v1163, 0.0
        %v1180 = vmax.f32 %v1164, 0.0
        %v1181 = vmax.f32 %v1165, 0.0
        %v1182 = vmax.f32 %v1166, 0.0
        %v1183 = vmax.f32 %v1167, 0.0
        %v1184 = vmax.f32 %v1168, 0.0
        %v1185 = vmax.f32 %v1169, 0.0
        %v1186 = vmax.f32 %v1170, 0.0
        %v1187 = vmax.f32 %v1171, 0.0
        %v1188 = vmax.f32 %v1172, 0.0
        %v1189 = vmax.f32 %v1173, 0.0
        %v1190 = vmax.f32 %v1174, 0.0
        %v1191 = vmax.f32 %v1175, 0.0
        %v1192 = vmax.f32 %v1176, 0.0
        %v1193 = vld [vmem:[%s449] sm:$0x1]
        %1194 = vmatprep.subr.mxu0 0.0
        %1195 = vmatpush1.msra.mxu0 %v1177
        %1196 = vmatprep.subr.mxu0 0.0
        %1197 = vmatpush1.msra.mxu0 %v1178
        %1198 = vmatprep.subr.mxu0 0.0
        %1199 = vmatpush1.msra.mxu0 %v1179
        %1200 = vmatprep.subr.mxu0 0.0
        %1201 = vmatpush1.msra.mxu0 %v1180
        %1202 = vmatprep.subr.mxu0 0.0
        %1203 = vmatpush1.msra.mxu0 %v1181
        %1204 = vmatprep.subr.mxu0 0.0
        %1205 = vmatpush1.msra.mxu0 %v1182
        %1206 = vmatprep.subr.mxu0 0.0
        %1207 = vmatpush1.msra.mxu0 %v1183
        %1208 = vmatprep.subr.mxu0 0.0
        %1209 = vmatpush1.msra.mxu0 %v1184
        %1210 = vmatprep.subr.mxu0 0.0
        %1211 = vmatpush1.msra.mxu0 %v1185
        %1212 = vmatprep.subr.mxu0 0.0
        %1213 = vmatpush1.msra.mxu0 %v1186
        %1214 = vmatprep.subr.mxu0 0.0
        %1215 = vmatpush1.msra.mxu0 %v1187
        %1216 = vmatprep.subr.mxu0 0.0
        %1217 = vmatpush1.msra.mxu0 %v1188
        %1218 = vmatprep.subr.mxu0 0.0
        %1219 = vmatpush1.msra.mxu0 %v1189
        %1220 = vmatprep.subr.mxu0 0.0
        %1221 = vmatpush1.msra.mxu0 %v1190
        %1222 = vmatprep.subr.mxu0 0.0
        %1223 = vmatpush1.msra.mxu0 %v1191
        %1224 = vmatprep.subr.mxu0 0.0
        %1225 = vmatpush1.msra.mxu0 %v1192
        %1226 = vmatprep.subr.mxu0 0.0
        %1227 = vmatpush1.msra.mxu0 0.0
        %1228 = vmatprep.subr.mxu0 0.0
        %1229 = vmatpush1.msra.mxu0 0.0
        %1230 = vmatprep.subr.mxu0 0.0
        %1231 = vmatpush1.msra.mxu0 0.0
        %1232 = vmatprep.subr.mxu0 0.0
        %1233 = vmatpush1.msra.mxu0 0.0
        %1234 = vmatprep.subr.mxu0 0.0
        %1235 = vmatpush1.msra.mxu0 0.0
        %1236 = vmatprep.subr.mxu0 0.0
        %1237 = vmatpush1.msra.mxu0 0.0
        %1238 = vmatprep.subr.mxu0 0.0
        %1239 = vmatpush1.msra.mxu0 0.0
        %1240 = vmatprep.subr.mxu0 0.0
        %1241 = vmatpush1.msra.mxu0 0.0
        %1242 = vmatprep.subr.mxu0 0.0
        %1243 = vmatpush1.msra.mxu0 0.0
        %1244 = vmatprep.subr.mxu0 0.0
        %1245 = vmatpush1.msra.mxu0 0.0
        %1246 = vmatprep.subr.mxu0 0.0
        %1247 = vmatpush1.msra.mxu0 0.0
        %1248 = vmatprep.subr.mxu0 0.0
        %1249 = vmatpush1.msra.mxu0 0.0
        %1250 = vmatprep.subr.mxu0 0.0
        %1251 = vmatpush1.msra.mxu0 0.0
        %1252 = vmatprep.subr.mxu0 0.0
        %1253 = vmatpush1.msra.mxu0 0.0
        %1254 = vmatprep.subr.mxu0 0.0
        %1255 = vmatpush1.msra.mxu0 0.0
        %1256 = vmatprep.subr.mxu0 0.0
        %1257 = vmatpush1.msra.mxu0 0.0
        %1258 = vmatprep.mubr.f32.mxu0 0.0
        %1259 = vmatmul.mubr.f32.gmra.mrb[0].mxu0 %v627
        %v1260 = vpop.f32.mrb[0].mxu0
        %v1261 = vadd.f32 0.0, %v1260
        %v1262 = vpop.f32.mrb[0].mxu0
        %1263 = vdwg.mxu0
        %v1264 = vmul.f32 %v1261, %v628
        %vm1265 = vcmask 1040384
        %v1266 = vsel %vm1265, %v1264, 0.0
        %1267 = vadd.xlane.f32.xlu0 %v1266
        %v1268 = vpop.xlane.xlu0 %1267
        %v1269 = vadd.f32 %v1193, %v1268
        %1270 = vst [vmem:[%s449] sm:$0x1] %v1269
      $region56: #{superpoint_loss.7} parent=43 // pred_fallthru
        _
      %p1271 = scmp.lt.s32.totalorder %s24, 1
      %s1272 = scalar_select %p1271, %s24, 1
      %p1273 = scmp.lt.s32.totalorder %s25, 0
      %s1274 = scalar_select %p1273, %s25, 0
      %s1275 = sadd.s32 %s1274, %s1272
      %s1276 = scalar_lea.vmem %s6, %s1275
      %p1277 = scmp.lt.s32.totalorder %s24, 1
      %s1278 = scalar_select %p1277, %s24, 1
      %p1279 = scmp.lt.s32.totalorder %s25, 0
      %s1280 = scalar_select %p1279, %s25, 0
      %s1281 = sadd.s32 %s1280, %s1278
      %s1282 = scalar_lea.vmem %s7, %s1281
      // Predicated region
      $region57: #{superpoint_loss.7} parent=43 // pred_check
        %p1283 = pneg %p222
      $region58: #{superpoint_loss.7} parent=43 // pred_check_branch
        %1285 = sbr.rel (%p1283) target = $region60
      $region59: #{superpoint_loss.7} parent=43 // pred_region
        _
      $region60: #{superpoint_loss.7} parent=43 // pred_fallthru
        _
      // Predicated region
      $region61: #{superpoint_loss.7} parent=43 // pred_check
        %p1286 = pneg %p250
      $region62: #{superpoint_loss.7} parent=43 // pred_check_branch
        %1288 = sbr.rel (%p1286) target = $region64
      $region63: #{superpoint_loss.7} parent=43 // pred_region
        _
      $region64: #{superpoint_loss.7} parent=43 // pred_fallthru
        _
    $region44: #{superpoint_loss.7} parent=5 // pred_fallthru
      _
    %p1289 = scmp.le.s32.totalorder 2, %s14
    // Predicated region
    $region65: #{superpoint_loss.7} parent=5 // pred_check
      %p1290 = pneg %p1289
    $region66: #{superpoint_loss.7} parent=5 // pred_check_branch
      %1292 = sbr.rel (%p1290) target = $region68
    $region67: #{superpoint_loss.7} parent=5 // pred_region
      %s1293 = ssub.s32 %s14, 2
      // Predicated region
      $region69: #{superpoint_loss.7} parent=67 // pred_check
        %p1294 = pneg %p228
      $region70: #{superpoint_loss.7} parent=67 // pred_check_branch
        %1296 = sbr.rel (%p1294) target = $region72
      $region71: #{superpoint_loss.7} parent=67 // pred_region
        %p1297 = scmp.lt.s32.totalorder %s27, 1
        %s1298 = scalar_select %p1297, %s27, 1
        %p1299 = scmp.lt.s32.totalorder %s28, 0
        %s1300 = scalar_select %p1299, %s28, 0
        %s1301 = sadd.s32 %s1300, %s1298
        %s1302 = scalar_lea.vmem %s6, %s1301
      $region72: #{superpoint_loss.7} parent=67 // pred_fallthru
        _
      // Predicated region
      $region73: #{superpoint_loss.7} parent=67 // pred_check
        %p1303 = pneg %p256
      $region74: #{superpoint_loss.7} parent=67 // pred_check_branch
        %1305 = sbr.rel (%p1303) target = $region76
      $region75: #{superpoint_loss.7} parent=67 // pred_region
        %p1306 = scmp.lt.s32.totalorder %s27, 1
        %s1307 = scalar_select %p1306, %s27, 1
        %p1308 = scmp.lt.s32.totalorder %s28, 0
        %s1309 = scalar_select %p1308, %s28, 0
        %s1310 = sadd.s32 %s1309, %s1307
        %s1311 = scalar_lea.vmem %s7, %s1310
      $region76: #{superpoint_loss.7} parent=67 // pred_fallthru
        _
    $region68: #{superpoint_loss.7} parent=5 // pred_fallthru
      _
  $region6: #{superpoint_loss.7} parent=0 // loop_footer
    %s18 = sadd.s32 1, %s14
  $region7: #{superpoint_loss.7} parent=0 // loop_footer_branch
    %13 = sbr.rel target = $region3
  $region8: #{superpoint_loss.7} parent=0 // loop_exit
    _

</llo_original>
